<compile_context>
chip_gen: v7x
topology: tpu7x:2x2x1
jax: 0.10.0
libtpu: 0.0.40
codegen_flags: <defaults>
</compile_context>

<pallas_src>
import functools
import math

import jax
import jax.numpy as jnp
from jax.experimental import pallas as pl
from jax.experimental.pallas import tpu as pltpu


# ----------------------------------------------------------------------------
# helpers
# ----------------------------------------------------------------------------
def _gelu_tanh(x):
    # TODO(synk): nn.GELU() default is exact erf-GELU; the tanh approximation is
    # used here (and in the reference) to guarantee clean Mosaic lowering.
    c = math.sqrt(2.0 / math.pi)
    return 0.5 * x * (1.0 + jnp.tanh(c * (x + 0.044715 * (x * x * x))))


# ----------------------------------------------------------------------------
# fused encoder-layer kernel (whole batch folded into one block)
# ----------------------------------------------------------------------------
def _encoder_layer_kernel(x_ref, wqkv_ref, bqkv_ref, wo_ref, bo_ref,
                          g1_ref, b1_ref, w1_ref, w2_ref, g2_ref, b2_ref,
                          o_ref, *, num_heads: int, batch: int, eps: float):
    x = x_ref[...]                                   # (M, D) f32, M = S*B, seq-major rows
    M, D = x.shape
    hd = D // num_heads

    # ---- QKV projection (batch folded into M; Q-scale pre-folded into Wqkv) --
    qkv = jnp.dot(x, wqkv_ref[...], preferred_element_type=jnp.float32) + bqkv_ref[...]
    q = qkv[:, 0 * D:1 * D]
    k = qkv[:, 1 * D:2 * D]
    v = qkv[:, 2 * D:3 * D]

    # Block-diagonal batch mask: row r of the seq-major flattening of (S, B, D)
    # belongs to batch (r % B); attention must not mix batch elements.
    rb = jax.lax.broadcasted_iota(jnp.int32, (M, M), 0) % batch
    cb = jax.lax.broadcasted_iota(jnp.int32, (M, M), 1) % batch
    same_batch = rb == cb

    wo = wo_ref[...]                                 # (D, D)
    attn = jnp.zeros((M, D), jnp.float32)
    # TODO(synk): the static head loop still uses 32-lane head slices; at
    # production S/B, batch the heads via dot_general and tile the (S*B)^2
    # scores flash-style over a kv grid axis instead of materializing them.
    for h in range(num_heads):
        lo, hi = h * hd, (h + 1) * hd
        s = jax.lax.dot_general(q[:, lo:hi], k[:, lo:hi],
                                (((1,), (1,)), ((), ())),
                                preferred_element_type=jnp.float32)      # (M, M)
        s = jnp.where(same_batch, s, -1e30)
        s = s - jnp.max(s, axis=-1, keepdims=True)
        p = jnp.exp(s)
        p = p * pl.reciprocal(jnp.sum(p, axis=-1, keepdims=True), approx=True)
        # TODO(synk): attention-prob dropout / attn_mask not implemented
        # (eval mode, src_mask=None path only).
        ctx = jnp.dot(p, v[:, lo:hi], preferred_element_type=jnp.float32)   # (M, hd)
        # Fold the head-concat into the output projection: accumulate through
        # the matching row block of Wo^T (no concatenate, no lane relayout).
        attn = attn + jnp.dot(ctx, wo[lo:hi, :], preferred_element_type=jnp.float32)
    attn = attn + bo_ref[...]

    # ---- residual + LayerNorm1 (dropout1 == identity in eval) ----------------
    y = x + attn
    mu = jnp.mean(y, axis=-1, keepdims=True)
    var = jnp.mean(jnp.square(y - mu), axis=-1, keepdims=True)
    y = (y - mu) * jax.lax.rsqrt(var + eps) * g1_ref[...] + b1_ref[...]

    # ---- Bayesian feed-forward (eval: weights == means) ----------------------
    h1 = jnp.dot(y, w1_ref[...], preferred_element_type=jnp.float32)            # (M, F)
    h2 = jnp.dot(_gelu_tanh(h1), w2_ref[...], preferred_element_type=jnp.float32)  # (M, D)

    # ---- residual + LayerNorm2 (dropout2 == identity in eval) ----------------
    z = y + h2
    mu2 = jnp.mean(z, axis=-1, keepdims=True)
    var2 = jnp.mean(jnp.square(z - mu2), axis=-1, keepdims=True)
    z = (z - mu2) * jax.lax.rsqrt(var2 + eps) * g2_ref[...] + b2_ref[...]

    o_ref[...] = z.astype(o_ref.dtype)


# ----------------------------------------------------------------------------
# wrapper
# ----------------------------------------------------------------------------
def bayes_transformer_encoder_layer(src, params, *, num_heads, eps=1e-5,
                                    training=False, rng=None):
    """src: [S, B, D] float32  ->  (out [S, B, D], kl scalar)."""
    S, B, D = src.shape
    F_ = params['weight_mean1'].shape[0]
    hd = D // num_heads
    M = S * B

    w1 = params['weight_mean1']                       # [F, D]
    w2 = params['weight_mean2']                       # [D, F]
    if training:
        # Bayesian weight perturbation (distributionally matches
        # sample_weight_diff(); RNG stream differs from torch).
        k1, k2 = jax.random.split(rng)
        w1 = w1 + jax.random.normal(k1, w1.shape, w1.dtype) * jnp.exp(params['weight_std1'])
        w2 = w2 + jax.random.normal(k2, w2.shape, w2.dtype) * jnp.exp(params['weight_std2'])

    # Parameter prep (weight-only): pre-transposed weights so the kernel only
    # issues x @ W MXU matmuls; 1/sqrt(hd) query scale folded into the Q
    # columns of Wqkv^T and bqkv.
    # TODO(synk): for production on v5e/v6e/v7x cast matmul operands to
    # bfloat16 here (keep f32 accumulation and f32 softmax/LayerNorm) for MXU
    # throughput and halved weight DMA; kept f32 so the correctness check
    # against the HIGHEST-precision reference stays tight.
    scale = 1.0 / math.sqrt(hd)
    qkv_scale = jnp.concatenate(
        [jnp.full((D,), scale, src.dtype), jnp.ones((2 * D,), src.dtype)])
    wqkv_t = params['wqkv'].T * qkv_scale[None, :]    # [D, 3D]
    bqkv = (params['bqkv'] * qkv_scale).reshape(1, -1)
    wo_t = params['wo'].T                             # [D, D]
    w1_t = w1.T                                       # [D, F]
    w2_t = w2.T                                       # [F, D]
    row = lambda a: a.reshape(1, -1)

    # Free row-major reshape (no extra HBM transpose pass): (S, B, D) -> (S*B, D).
    x2d = src.reshape(M, D)

    kernel = functools.partial(_encoder_layer_kernel, num_heads=num_heads,
                               batch=B, eps=eps)
    # Single grid step covering the whole batch: every matmul runs with
    # M = S*B rows; no per-batch-element step overhead.
    # TODO(synk): on v7x (2 TensorCores) split the batch over >=2 parallel
    # grid steps (batch-major layout) once B is large enough; single step is
    # the right choice for single-TC v5e/v6e at these sizes.
    out2d = pl.pallas_call(
        kernel,
        out_shape=jax.ShapeDtypeStruct((M, D), src.dtype),
        grid_spec=pltpu.PrefetchScalarGridSpec(
            num_scalar_prefetch=0,
            grid=(1,),
            in_specs=[
                pl.BlockSpec((M, D), lambda i: (0, 0)),       # x (S*B, D)
                pl.BlockSpec((D, 3 * D), lambda i: (0, 0)),   # Wqkv^T (Q cols pre-scaled)
                pl.BlockSpec((1, 3 * D), lambda i: (0, 0)),   # b_qkv
                pl.BlockSpec((D, D), lambda i: (0, 0)),       # Wo^T
                pl.BlockSpec((1, D), lambda i: (0, 0)),       # b_o
                pl.BlockSpec((1, D), lambda i: (0, 0)),       # LN1 gamma
                pl.BlockSpec((1, D), lambda i: (0, 0)),       # LN1 beta
                pl.BlockSpec((D, F_), lambda i: (0, 0)),      # W1^T
                pl.BlockSpec((F_, D), lambda i: (0, 0)),      # W2^T
                pl.BlockSpec((1, D), lambda i: (0, 0)),       # LN2 gamma
                pl.BlockSpec((1, D), lambda i: (0, 0)),       # LN2 beta
            ],
            out_specs=pl.BlockSpec((M, D), lambda i: (0, 0)),
        ),
        compiler_params=pltpu.CompilerParams(
            dimension_semantics=("arbitrary",)),
    )(x2d, wqkv_t, bqkv, wo_t, row(params['bo']),
      row(params['ln1_g']), row(params['ln1_b']), w1_t, w2_t,
      row(params['ln2_g']), row(params['ln2_b']))

    # KL term: tiny parameter-only reduction, computed in plain jnp (per perf
    # review a dedicated pallas_call costs more in dispatch + an extra HBM
    # read of the variational params than the reduction itself).  Matches the
    # torch module, which omits the constant "-1" of the standard Gaussian KL.
    def _half(m, s):
        return jnp.sum(m * m - 2.0 * s + jnp.exp(2.0 * s))
    n_theta = params['weight_mean1'].size + params['weight_mean2'].size
    kl = (_half(params['weight_mean1'], params['weight_std1']) +
          _half(params['weight_mean2'], params['weight_std2'])) / (2.0 * n_theta)

    return out2d.reshape(S, B, D), kl


# ----------------------------------------------------------------------------
# pure-JAX reference (high-precision matmuls) for the correctness check
# ----------------------------------------------------------------------------
def _layer_norm(x, g, b, eps):
    mu = jnp.mean(x, axis=-1, keepdims=True)
    var = jnp.mean(jnp.square(x - mu), axis=-1, keepdims=True)
    return (x - mu) * jax.lax.rsqrt(var + eps) * g + b


def reference_forward(src, p, *, num_heads, eps=1e-5):
    S, B, D = src.shape
    hd = D // num_heads
    scale = 1.0 / math.sqrt(hd)
    hp = jax.lax.Precision.HIGHEST

    qkv = jnp.einsum('sbd,ed->sbe', src, p['wqkv'], precision=hp) + p['bqkv']
    q, k, v = jnp.split(qkv, 3, axis=-1)
    q = q * scale

    def to_heads(t):      # [S, B, D] -> [B*H, S, hd]  (matches torch view/transpose)
        return t.reshape(S, B * num_heads, hd).transpose(1, 0, 2)

    qh, kh, vh = to_heads(q), to_heads(k), to_heads(v)
    scores = jnp.einsum('nqh,nkh->nqk', qh, kh, precision=hp)
    probs = jax.nn.softmax(scores, axis=-1)
    ctx = jnp.einsum('nqk,nkh->nqh', probs, vh, precision=hp)
    ctx = ctx.transpose(1, 0, 2).reshape(S, B, D)
    attn = jnp.einsum('sbd,ed->sbe', ctx, p['wo'], precision=hp) + p['bo']

    x = _layer_norm(src + attn, p['ln1_g'], p['ln1_b'], eps)
    h1 = jnp.einsum('sbd,fd->sbf', x, p['weight_mean1'], precision=hp)
    h2 = jnp.einsum('sbf,df->sbd', _gelu_tanh(h1), p['weight_mean2'], precision=hp)
    x = _layer_norm(x + h2, p['ln2_g'], p['ln2_b'], eps)

    tm = jnp.concatenate([p['weight_mean1'], p['weight_mean2'].T], axis=-1)
    ts = jnp.concatenate([p['weight_std1'], p['weight_std2'].T], axis=-1)
    kl = jnp.mean(tm ** 2.0 - ts * 2.0 + jnp.exp(ts * 2.0)) / 2.0
    return x, kl


# ----------------------------------------------------------------------------
if __name__ == "__main__":
    d_model, nhead, dim_ff = 128, 4, 256
    seq_len, batch = 16, 2

    key = jax.random.PRNGKey(0)
    ks = jax.random.split(key, 13)
    stdm = 1.0 / math.sqrt(d_model)
    stdi = 1.0 / math.sqrt(dim_ff)

    params = {
        'wqkv': jax.random.uniform(ks[0], (3 * d_model, d_model), jnp.float32, -stdm, stdm),
        'bqkv': 0.02 * jax.random.normal(ks[1], (3 * d_model,), jnp.float32),
        'wo':   jax.random.uniform(ks[2], (d_model, d_model), jnp.float32, -stdm, stdm),
        'bo':   0.02 * jax.random.normal(ks[3], (d_model,), jnp.float32),
        'weight_mean1': jax.random.uniform(ks[4], (dim_ff, d_model), jnp.float32, -stdm, stdm),
        'weight_mean2': jax.random.uniform(ks[5], (d_model, dim_ff), jnp.float32, -stdi, stdi),
        'weight_std1':  jax.random.uniform(ks[6], (dim_ff, d_model), jnp.float32,
                                           2.0 * math.log(stdm), math.log(stdm)),
        'weight_std2':  jax.random.uniform(ks[7], (d_model, dim_ff), jnp.float32,
                                           2.0 * math.log(stdi), math.log(stdi)),
        'ln1_g': 1.0 + 0.05 * jax.random.normal(ks[8], (d_model,), jnp.float32),
        'ln1_b': 0.05 * jax.random.normal(ks[9], (d_model,), jnp.float32),
        'ln2_g': 1.0 + 0.05 * jax.random.normal(ks[10], (d_model,), jnp.float32),
        'ln2_b': 0.05 * jax.random.normal(ks[11], (d_model,), jnp.float32),
    }
    src = jax.random.normal(ks[12], (seq_len, batch, d_model), jnp.float32)

    out, kl = bayes_transformer_encoder_layer(src, params, num_heads=nhead, training=False)
    out, kl = jax.block_until_ready((out, kl))

    ref_out, ref_kl = reference_forward(src, params, num_heads=nhead)
    assert out.shape == (seq_len, batch, d_model)
    # Tolerance covers TPU default-precision f32 MXU matmuls (bf16-pass based)
    # plus the approx EUP reciprocal in the softmax; real bugs give O(1) errors.
    assert jnp.allclose(out, ref_out, atol=2e-2, rtol=2e-2), (
        f"output mismatch, max abs err {float(jnp.max(jnp.abs(out - ref_out)))}")
    assert jnp.allclose(kl, ref_kl, atol=1e-3, rtol=1e-3), (
        f"kl mismatch {float(kl)} vs {float(ref_kl)}")

    print("KERNEL_OK")
</pallas_src>

<mosaic_0001>
module attributes {stable_mosaic.version = 11 : i64} {
  func.func @_encoder_layer_kernel(%arg0: i32, %arg1: memref<32x128xf32, #tpu.memory_space<vmem>>, %arg2: memref<128x384xf32, #tpu.memory_space<vmem>>, %arg3: memref<1x384xf32, #tpu.memory_space<vmem>>, %arg4: memref<128x128xf32, #tpu.memory_space<vmem>>, %arg5: memref<1x128xf32, #tpu.memory_space<vmem>>, %arg6: memref<1x128xf32, #tpu.memory_space<vmem>>, %arg7: memref<1x128xf32, #tpu.memory_space<vmem>>, %arg8: memref<128x256xf32, #tpu.memory_space<vmem>>, %arg9: memref<256x128xf32, #tpu.memory_space<vmem>>, %arg10: memref<1x128xf32, #tpu.memory_space<vmem>>, %arg11: memref<1x128xf32, #tpu.memory_space<vmem>>, %arg12: memref<32x128xf32, #tpu.memory_space<vmem>>) attributes {dimension_semantics = [#tpu.dimension_semantics<arbitrary>], iteration_bounds = array<i64: 1>, scalar_prefetch = 0 : i64, scratch_operands = 0 : i64, tpu.core_type = #tpu.core_type<tc>, window_params = [{pipeline_mode = #tpu.pipeline_mode<synchronous>, transform_indices = @transform_0, window_bounds = array<i64: 32, 128>}, {pipeline_mode = #tpu.pipeline_mode<synchronous>, transform_indices = @transform_1, window_bounds = array<i64: 128, 384>}, {pipeline_mode = #tpu.pipeline_mode<synchronous>, transform_indices = @transform_2, window_bounds = array<i64: 1, 384>}, {pipeline_mode = #tpu.pipeline_mode<synchronous>, transform_indices = @transform_3, window_bounds = array<i64: 128, 128>}, {pipeline_mode = #tpu.pipeline_mode<synchronous>, transform_indices = @transform_4, window_bounds = array<i64: 1, 128>}, {pipeline_mode = #tpu.pipeline_mode<synchronous>, transform_indices = @transform_5, window_bounds = array<i64: 1, 128>}, {pipeline_mode = #tpu.pipeline_mode<synchronous>, transform_indices = @transform_6, window_bounds = array<i64: 1, 128>}, {pipeline_mode = #tpu.pipeline_mode<synchronous>, transform_indices = @transform_7, window_bounds = array<i64: 128, 256>}, {pipeline_mode = #tpu.pipeline_mode<synchronous>, transform_indices = @transform_8, window_bounds = array<i64: 256, 128>}, {pipeline_mode = #tpu.pipeline_mode<synchronous>, transform_indices = @transform_9, window_bounds = array<i64: 1, 128>}, {pipeline_mode = #tpu.pipeline_mode<synchronous>, transform_indices = @transform_10, window_bounds = array<i64: 1, 128>}, {pipeline_mode = #tpu.pipeline_mode<synchronous>, transform_indices = @transform_11, window_bounds = array<i64: 32, 128>}]} {
    %c0 = arith.constant 0 : index
    %c0_0 = arith.constant 0 : index
    %0 = vector.load %arg1[%c0, %c0_0] : memref<32x128xf32, #tpu.memory_space<vmem>>, vector<32x128xf32>
    %c0_1 = arith.constant 0 : index
    %c0_2 = arith.constant 0 : index
    %1 = vector.load %arg2[%c0_1, %c0_2] : memref<128x384xf32, #tpu.memory_space<vmem>>, vector<128x384xf32>
    %cst = arith.constant dense<0.000000e+00> : vector<32x384xf32>
    %2 = tpu.matmul %0, %1, %cst {dimension_numbers = #tpu.dot_dimension_numbers<[1], [0], [0], [1], [0, 0, 1, 1], [], []>} : vector<32x128xf32>, vector<128x384xf32>, vector<32x384xf32> -> vector<32x384xf32>
    %c0_3 = arith.constant 0 : index
    %c0_4 = arith.constant 0 : index
    %3 = vector.load %arg3[%c0_3, %c0_4] : memref<1x384xf32, #tpu.memory_space<vmem>>, vector<1x384xf32>
    %4 = vector.broadcast %3 : vector<1x384xf32> to vector<32x384xf32>
    %5 = arith.addf %2, %4 : vector<32x384xf32>
    %6 = vector.extract_strided_slice %5 {offsets = [0, 0], sizes = [32, 128], strides = [1, 1]} : vector<32x384xf32> to vector<32x128xf32>
    %7 = vector.extract_strided_slice %5 {offsets = [0, 128], sizes = [32, 128], strides = [1, 1]} : vector<32x384xf32> to vector<32x128xf32>
    %8 = vector.extract_strided_slice %5 {offsets = [0, 256], sizes = [32, 128], strides = [1, 1]} : vector<32x384xf32> to vector<32x128xf32>
    %9 = tpu.iota {dimensions = array<i32: 0>} : vector<32x32xi32>
    %c2_i32 = arith.constant 2 : i32
    %c0_i32 = arith.constant 0 : i32
    %10 = arith.cmpi eq, %c2_i32, %c0_i32 : i32
    %c1_i32 = arith.constant 1 : i32
    %11 = arith.select %10, %c1_i32, %c2_i32 : i32
    %12 = vector.broadcast %11 : i32 to vector<32x32xi32>
    %13 = arith.remsi %9, %12 : vector<32x32xi32>
    %c0_i32_5 = arith.constant 0 : i32
    %14 = vector.broadcast %c0_i32_5 : i32 to vector<32x32xi32>
    %15 = arith.cmpi ne, %13, %14 : vector<32x32xi32>
    %c0_i32_6 = arith.constant 0 : i32
    %16 = vector.broadcast %c0_i32_6 : i32 to vector<32x32xi32>
    %17 = arith.cmpi slt, %13, %16 : vector<32x32xi32>
    %c0_i32_7 = arith.constant 0 : i32
    %18 = arith.cmpi slt, %11, %c0_i32_7 : i32
    %19 = vector.broadcast %18 : i1 to vector<32x32xi1>
    %20 = vector.broadcast %19 : vector<32x32xi1> to vector<32x32xi1>
    %21 = arith.xori %17, %20 : vector<32x32xi1>
    %22 = arith.andi %21, %15 : vector<32x32xi1>
    %23 = vector.broadcast %11 : i32 to vector<32x32xi32>
    %24 = arith.addi %13, %23 : vector<32x32xi32>
    %25 = arith.select %22, %24, %13 : vector<32x32xi1>, vector<32x32xi32>
    %26 = tpu.iota {dimensions = array<i32: 1>} : vector<32x32xi32>
    %c2_i32_8 = arith.constant 2 : i32
    %c0_i32_9 = arith.constant 0 : i32
    %27 = arith.cmpi eq, %c2_i32_8, %c0_i32_9 : i32
    %c1_i32_10 = arith.constant 1 : i32
    %28 = arith.select %27, %c1_i32_10, %c2_i32_8 : i32
    %29 = vector.broadcast %28 : i32 to vector<32x32xi32>
    %30 = arith.remsi %26, %29 : vector<32x32xi32>
    %c0_i32_11 = arith.constant 0 : i32
    %31 = vector.broadcast %c0_i32_11 : i32 to vector<32x32xi32>
    %32 = arith.cmpi ne, %30, %31 : vector<32x32xi32>
    %c0_i32_12 = arith.constant 0 : i32
    %33 = vector.broadcast %c0_i32_12 : i32 to vector<32x32xi32>
    %34 = arith.cmpi slt, %30, %33 : vector<32x32xi32>
    %c0_i32_13 = arith.constant 0 : i32
    %35 = arith.cmpi slt, %28, %c0_i32_13 : i32
    %36 = vector.broadcast %35 : i1 to vector<32x32xi1>
    %37 = vector.broadcast %36 : vector<32x32xi1> to vector<32x32xi1>
    %38 = arith.xori %34, %37 : vector<32x32xi1>
    %39 = arith.andi %38, %32 : vector<32x32xi1>
    %40 = vector.broadcast %28 : i32 to vector<32x32xi32>
    %41 = arith.addi %30, %40 : vector<32x32xi32>
    %42 = arith.select %39, %41, %30 : vector<32x32xi1>, vector<32x32xi32>
    %43 = arith.cmpi eq, %25, %42 : vector<32x32xi32>
    %c0_14 = arith.constant 0 : index
    %c0_15 = arith.constant 0 : index
    %44 = vector.load %arg4[%c0_14, %c0_15] : memref<128x128xf32, #tpu.memory_space<vmem>>, vector<128x128xf32>
    %cst_16 = arith.constant 0.000000e+00 : f32
    %45 = vector.broadcast %cst_16 : f32 to vector<32x128xf32>
    %46 = vector.extract_strided_slice %6 {offsets = [0, 0], sizes = [32, 32], strides = [1, 1]} : vector<32x128xf32> to vector<32x32xf32>
    %47 = vector.extract_strided_slice %7 {offsets = [0, 0], sizes = [32, 32], strides = [1, 1]} : vector<32x128xf32> to vector<32x32xf32>
    %cst_17 = arith.constant dense<0.000000e+00> : vector<32x32xf32>
    %48 = tpu.matmul %46, %47, %cst_17 {dimension_numbers = #tpu.dot_dimension_numbers<[1], [1], [0], [0], [0, 0, 1, 0], [], []>} : vector<32x32xf32>, vector<32x32xf32>, vector<32x32xf32> -> vector<32x32xf32>
    %cst_18 = arith.constant -1.000000e+30 : f32
    %49 = vector.broadcast %cst_18 : f32 to vector<32x32xf32>
    %50 = arith.select %43, %48, %49 : vector<32x32xi1>, vector<32x32xf32>
    %cst_19 = arith.constant dense<0xFF800000> : vector<32xf32>
    %51 = vector.multi_reduction <maximumf>, %50, %cst_19 [1] : vector<32x32xf32> to vector<32xf32>
    %52 = vector.shape_cast %51 : vector<32xf32> to vector<32x1xf32>
    %53 = vector.broadcast %52 : vector<32x1xf32> to vector<32x32xf32>
    %54 = arith.subf %50, %53 : vector<32x32xf32>
    %55 = math.exp %54 : vector<32x32xf32>
    %cst_20 = arith.constant dense<0.000000e+00> : vector<32xf32>
    %56 = vector.multi_reduction <add>, %55, %cst_20 [1] : vector<32x32xf32> to vector<32xf32>
    %57 = vector.shape_cast %56 : vector<32xf32> to vector<32x1xf32>
    %58 = tpu.reciprocal %57 {approx = true} : vector<32x1xf32> -> vector<32x1xf32>
    %59 = vector.broadcast %58 : vector<32x1xf32> to vector<32x32xf32>
    %60 = arith.mulf %55, %59 : vector<32x32xf32>
    %61 = vector.extract_strided_slice %8 {offsets = [0, 0], sizes = [32, 32], strides = [1, 1]} : vector<32x128xf32> to vector<32x32xf32>
    %cst_21 = arith.constant dense<0.000000e+00> : vector<32x32xf32>
    %62 = tpu.matmul %60, %61, %cst_21 {dimension_numbers = #tpu.dot_dimension_numbers<[1], [0], [0], [1], [0, 0, 1, 1], [], []>} : vector<32x32xf32>, vector<32x32xf32>, vector<32x32xf32> -> vector<32x32xf32>
    %63 = vector.extract_strided_slice %44 {offsets = [0, 0], sizes = [32, 128], strides = [1, 1]} : vector<128x128xf32> to vector<32x128xf32>
    %cst_22 = arith.constant dense<0.000000e+00> : vector<32x128xf32>
    %64 = tpu.matmul %62, %63, %cst_22 {dimension_numbers = #tpu.dot_dimension_numbers<[1], [0], [0], [1], [0, 0, 1, 1], [], []>} : vector<32x32xf32>, vector<32x128xf32>, vector<32x128xf32> -> vector<32x128xf32>
    %65 = arith.addf %45, %64 : vector<32x128xf32>
    %66 = vector.extract_strided_slice %6 {offsets = [0, 32], sizes = [32, 32], strides = [1, 1]} : vector<32x128xf32> to vector<32x32xf32>
    %67 = vector.extract_strided_slice %7 {offsets = [0, 32], sizes = [32, 32], strides = [1, 1]} : vector<32x128xf32> to vector<32x32xf32>
    %cst_23 = arith.constant dense<0.000000e+00> : vector<32x32xf32>
    %68 = tpu.matmul %66, %67, %cst_23 {dimension_numbers = #tpu.dot_dimension_numbers<[1], [1], [0], [0], [0, 0, 1, 0], [], []>} : vector<32x32xf32>, vector<32x32xf32>, vector<32x32xf32> -> vector<32x32xf32>
    %cst_24 = arith.constant -1.000000e+30 : f32
    %69 = vector.broadcast %cst_24 : f32 to vector<32x32xf32>
    %70 = arith.select %43, %68, %69 : vector<32x32xi1>, vector<32x32xf32>
    %cst_25 = arith.constant dense<0xFF800000> : vector<32xf32>
    %71 = vector.multi_reduction <maximumf>, %70, %cst_25 [1] : vector<32x32xf32> to vector<32xf32>
    %72 = vector.shape_cast %71 : vector<32xf32> to vector<32x1xf32>
    %73 = vector.broadcast %72 : vector<32x1xf32> to vector<32x32xf32>
    %74 = arith.subf %70, %73 : vector<32x32xf32>
    %75 = math.exp %74 : vector<32x32xf32>
    %cst_26 = arith.constant dense<0.000000e+00> : vector<32xf32>
    %76 = vector.multi_reduction <add>, %75, %cst_26 [1] : vector<32x32xf32> to vector<32xf32>
    %77 = vector.shape_cast %76 : vector<32xf32> to vector<32x1xf32>
    %78 = tpu.reciprocal %77 {approx = true} : vector<32x1xf32> -> vector<32x1xf32>
    %79 = vector.broadcast %78 : vector<32x1xf32> to vector<32x32xf32>
    %80 = arith.mulf %75, %79 : vector<32x32xf32>
    %81 = vector.extract_strided_slice %8 {offsets = [0, 32], sizes = [32, 32], strides = [1, 1]} : vector<32x128xf32> to vector<32x32xf32>
    %cst_27 = arith.constant dense<0.000000e+00> : vector<32x32xf32>
    %82 = tpu.matmul %80, %81, %cst_27 {dimension_numbers = #tpu.dot_dimension_numbers<[1], [0], [0], [1], [0, 0, 1, 1], [], []>} : vector<32x32xf32>, vector<32x32xf32>, vector<32x32xf32> -> vector<32x32xf32>
    %83 = vector.extract_strided_slice %44 {offsets = [32, 0], sizes = [32, 128], strides = [1, 1]} : vector<128x128xf32> to vector<32x128xf32>
    %cst_28 = arith.constant dense<0.000000e+00> : vector<32x128xf32>
    %84 = tpu.matmul %82, %83, %cst_28 {dimension_numbers = #tpu.dot_dimension_numbers<[1], [0], [0], [1], [0, 0, 1, 1], [], []>} : vector<32x32xf32>, vector<32x128xf32>, vector<32x128xf32> -> vector<32x128xf32>
    %85 = arith.addf %65, %84 : vector<32x128xf32>
    %86 = vector.extract_strided_slice %6 {offsets = [0, 64], sizes = [32, 32], strides = [1, 1]} : vector<32x128xf32> to vector<32x32xf32>
    %87 = vector.extract_strided_slice %7 {offsets = [0, 64], sizes = [32, 32], strides = [1, 1]} : vector<32x128xf32> to vector<32x32xf32>
    %cst_29 = arith.constant dense<0.000000e+00> : vector<32x32xf32>
    %88 = tpu.matmul %86, %87, %cst_29 {dimension_numbers = #tpu.dot_dimension_numbers<[1], [1], [0], [0], [0, 0, 1, 0], [], []>} : vector<32x32xf32>, vector<32x32xf32>, vector<32x32xf32> -> vector<32x32xf32>
    %cst_30 = arith.constant -1.000000e+30 : f32
    %89 = vector.broadcast %cst_30 : f32 to vector<32x32xf32>
    %90 = arith.select %43, %88, %89 : vector<32x32xi1>, vector<32x32xf32>
    %cst_31 = arith.constant dense<0xFF800000> : vector<32xf32>
    %91 = vector.multi_reduction <maximumf>, %90, %cst_31 [1] : vector<32x32xf32> to vector<32xf32>
    %92 = vector.shape_cast %91 : vector<32xf32> to vector<32x1xf32>
    %93 = vector.broadcast %92 : vector<32x1xf32> to vector<32x32xf32>
    %94 = arith.subf %90, %93 : vector<32x32xf32>
    %95 = math.exp %94 : vector<32x32xf32>
    %cst_32 = arith.constant dense<0.000000e+00> : vector<32xf32>
    %96 = vector.multi_reduction <add>, %95, %cst_32 [1] : vector<32x32xf32> to vector<32xf32>
    %97 = vector.shape_cast %96 : vector<32xf32> to vector<32x1xf32>
    %98 = tpu.reciprocal %97 {approx = true} : vector<32x1xf32> -> vector<32x1xf32>
    %99 = vector.broadcast %98 : vector<32x1xf32> to vector<32x32xf32>
    %100 = arith.mulf %95, %99 : vector<32x32xf32>
    %101 = vector.extract_strided_slice %8 {offsets = [0, 64], sizes = [32, 32], strides = [1, 1]} : vector<32x128xf32> to vector<32x32xf32>
    %cst_33 = arith.constant dense<0.000000e+00> : vector<32x32xf32>
    %102 = tpu.matmul %100, %101, %cst_33 {dimension_numbers = #tpu.dot_dimension_numbers<[1], [0], [0], [1], [0, 0, 1, 1], [], []>} : vector<32x32xf32>, vector<32x32xf32>, vector<32x32xf32> -> vector<32x32xf32>
    %103 = vector.extract_strided_slice %44 {offsets = [64, 0], sizes = [32, 128], strides = [1, 1]} : vector<128x128xf32> to vector<32x128xf32>
    %cst_34 = arith.constant dense<0.000000e+00> : vector<32x128xf32>
    %104 = tpu.matmul %102, %103, %cst_34 {dimension_numbers = #tpu.dot_dimension_numbers<[1], [0], [0], [1], [0, 0, 1, 1], [], []>} : vector<32x32xf32>, vector<32x128xf32>, vector<32x128xf32> -> vector<32x128xf32>
    %105 = arith.addf %85, %104 : vector<32x128xf32>
    %106 = vector.extract_strided_slice %6 {offsets = [0, 96], sizes = [32, 32], strides = [1, 1]} : vector<32x128xf32> to vector<32x32xf32>
    %107 = vector.extract_strided_slice %7 {offsets = [0, 96], sizes = [32, 32], strides = [1, 1]} : vector<32x128xf32> to vector<32x32xf32>
    %cst_35 = arith.constant dense<0.000000e+00> : vector<32x32xf32>
    %108 = tpu.matmul %106, %107, %cst_35 {dimension_numbers = #tpu.dot_dimension_numbers<[1], [1], [0], [0], [0, 0, 1, 0], [], []>} : vector<32x32xf32>, vector<32x32xf32>, vector<32x32xf32> -> vector<32x32xf32>
    %cst_36 = arith.constant -1.000000e+30 : f32
    %109 = vector.broadcast %cst_36 : f32 to vector<32x32xf32>
    %110 = arith.select %43, %108, %109 : vector<32x32xi1>, vector<32x32xf32>
    %cst_37 = arith.constant dense<0xFF800000> : vector<32xf32>
    %111 = vector.multi_reduction <maximumf>, %110, %cst_37 [1] : vector<32x32xf32> to vector<32xf32>
    %112 = vector.shape_cast %111 : vector<32xf32> to vector<32x1xf32>
    %113 = vector.broadcast %112 : vector<32x1xf32> to vector<32x32xf32>
    %114 = arith.subf %110, %113 : vector<32x32xf32>
    %115 = math.exp %114 : vector<32x32xf32>
    %cst_38 = arith.constant dense<0.000000e+00> : vector<32xf32>
    %116 = vector.multi_reduction <add>, %115, %cst_38 [1] : vector<32x32xf32> to vector<32xf32>
    %117 = vector.shape_cast %116 : vector<32xf32> to vector<32x1xf32>
    %118 = tpu.reciprocal %117 {approx = true} : vector<32x1xf32> -> vector<32x1xf32>
    %119 = vector.broadcast %118 : vector<32x1xf32> to vector<32x32xf32>
    %120 = arith.mulf %115, %119 : vector<32x32xf32>
    %121 = vector.extract_strided_slice %8 {offsets = [0, 96], sizes = [32, 32], strides = [1, 1]} : vector<32x128xf32> to vector<32x32xf32>
    %cst_39 = arith.constant dense<0.000000e+00> : vector<32x32xf32>
    %122 = tpu.matmul %120, %121, %cst_39 {dimension_numbers = #tpu.dot_dimension_numbers<[1], [0], [0], [1], [0, 0, 1, 1], [], []>} : vector<32x32xf32>, vector<32x32xf32>, vector<32x32xf32> -> vector<32x32xf32>
    %123 = vector.extract_strided_slice %44 {offsets = [96, 0], sizes = [32, 128], strides = [1, 1]} : vector<128x128xf32> to vector<32x128xf32>
    %cst_40 = arith.constant dense<0.000000e+00> : vector<32x128xf32>
    %124 = tpu.matmul %122, %123, %cst_40 {dimension_numbers = #tpu.dot_dimension_numbers<[1], [0], [0], [1], [0, 0, 1, 1], [], []>} : vector<32x32xf32>, vector<32x128xf32>, vector<32x128xf32> -> vector<32x128xf32>
    %125 = arith.addf %105, %124 : vector<32x128xf32>
    %c0_41 = arith.constant 0 : index
    %c0_42 = arith.constant 0 : index
    %126 = vector.load %arg5[%c0_41, %c0_42] : memref<1x128xf32, #tpu.memory_space<vmem>>, vector<1x128xf32>
    %127 = vector.broadcast %126 : vector<1x128xf32> to vector<32x128xf32>
    %128 = arith.addf %125, %127 : vector<32x128xf32>
    %129 = arith.addf %0, %128 : vector<32x128xf32>
    %cst_43 = arith.constant dense<0.000000e+00> : vector<32xf32>
    %130 = vector.multi_reduction <add>, %129, %cst_43 [1] : vector<32x128xf32> to vector<32xf32>
    %131 = vector.shape_cast %130 : vector<32xf32> to vector<32x1xf32>
    %cst_44 = arith.constant 1.280000e+02 : f32
    %132 = vector.broadcast %cst_44 : f32 to vector<32x1xf32>
    %133 = arith.divf %131, %132 : vector<32x1xf32>
    %134 = vector.broadcast %133 : vector<32x1xf32> to vector<32x128xf32>
    %135 = arith.subf %129, %134 : vector<32x128xf32>
    %136 = arith.mulf %135, %135 : vector<32x128xf32>
    %cst_45 = arith.constant dense<0.000000e+00> : vector<32xf32>
    %137 = vector.multi_reduction <add>, %136, %cst_45 [1] : vector<32x128xf32> to vector<32xf32>
    %138 = vector.shape_cast %137 : vector<32xf32> to vector<32x1xf32>
    %cst_46 = arith.constant 1.280000e+02 : f32
    %139 = vector.broadcast %cst_46 : f32 to vector<32x1xf32>
    %140 = arith.divf %138, %139 : vector<32x1xf32>
    %141 = vector.broadcast %133 : vector<32x1xf32> to vector<32x128xf32>
    %142 = arith.subf %129, %141 : vector<32x128xf32>
    %cst_47 = arith.constant 9.99999974E-6 : f32
    %143 = vector.broadcast %cst_47 : f32 to vector<32x1xf32>
    %144 = arith.addf %140, %143 : vector<32x1xf32>
    %145 = math.rsqrt %144 : vector<32x1xf32>
    %146 = vector.broadcast %145 : vector<32x1xf32> to vector<32x128xf32>
    %147 = arith.mulf %142, %146 : vector<32x128xf32>
    %c0_48 = arith.constant 0 : index
    %c0_49 = arith.constant 0 : index
    %148 = vector.load %arg6[%c0_48, %c0_49] : memref<1x128xf32, #tpu.memory_space<vmem>>, vector<1x128xf32>
    %149 = vector.broadcast %148 : vector<1x128xf32> to vector<32x128xf32>
    %150 = arith.mulf %147, %149 : vector<32x128xf32>
    %c0_50 = arith.constant 0 : index
    %c0_51 = arith.constant 0 : index
    %151 = vector.load %arg7[%c0_50, %c0_51] : memref<1x128xf32, #tpu.memory_space<vmem>>, vector<1x128xf32>
    %152 = vector.broadcast %151 : vector<1x128xf32> to vector<32x128xf32>
    %153 = arith.addf %150, %152 : vector<32x128xf32>
    %c0_52 = arith.constant 0 : index
    %c0_53 = arith.constant 0 : index
    %154 = vector.load %arg8[%c0_52, %c0_53] : memref<128x256xf32, #tpu.memory_space<vmem>>, vector<128x256xf32>
    %cst_54 = arith.constant dense<0.000000e+00> : vector<32x256xf32>
    %155 = tpu.matmul %153, %154, %cst_54 {dimension_numbers = #tpu.dot_dimension_numbers<[1], [0], [0], [1], [0, 0, 1, 1], [], []>} : vector<32x128xf32>, vector<128x256xf32>, vector<32x256xf32> -> vector<32x256xf32>
    %cst_55 = arith.constant 5.000000e-01 : f32
    %156 = vector.broadcast %cst_55 : f32 to vector<32x256xf32>
    %157 = arith.mulf %156, %155 : vector<32x256xf32>
    %158 = arith.mulf %155, %155 : vector<32x256xf32>
    %159 = arith.mulf %158, %155 : vector<32x256xf32>
    %cst_56 = arith.constant 4.471500e-02 : f32
    %160 = vector.broadcast %cst_56 : f32 to vector<32x256xf32>
    %161 = arith.mulf %160, %159 : vector<32x256xf32>
    %162 = arith.addf %155, %161 : vector<32x256xf32>
    %cst_57 = arith.constant 0.797884583 : f32
    %163 = vector.broadcast %cst_57 : f32 to vector<32x256xf32>
    %164 = arith.mulf %163, %162 : vector<32x256xf32>
    %165 = math.tanh %164 : vector<32x256xf32>
    %cst_58 = arith.constant 1.000000e+00 : f32
    %166 = vector.broadcast %cst_58 : f32 to vector<32x256xf32>
    %167 = arith.addf %166, %165 : vector<32x256xf32>
    %168 = arith.mulf %157, %167 : vector<32x256xf32>
    %c0_59 = arith.constant 0 : index
    %c0_60 = arith.constant 0 : index
    %169 = vector.load %arg9[%c0_59, %c0_60] : memref<256x128xf32, #tpu.memory_space<vmem>>, vector<256x128xf32>
    %cst_61 = arith.constant dense<0.000000e+00> : vector<32x128xf32>
    %170 = tpu.matmul %168, %169, %cst_61 {dimension_numbers = #tpu.dot_dimension_numbers<[1], [0], [0], [1], [0, 0, 1, 1], [], []>} : vector<32x256xf32>, vector<256x128xf32>, vector<32x128xf32> -> vector<32x128xf32>
    %171 = arith.addf %153, %170 : vector<32x128xf32>
    %cst_62 = arith.constant dense<0.000000e+00> : vector<32xf32>
    %172 = vector.multi_reduction <add>, %171, %cst_62 [1] : vector<32x128xf32> to vector<32xf32>
    %173 = vector.shape_cast %172 : vector<32xf32> to vector<32x1xf32>
    %cst_63 = arith.constant 1.280000e+02 : f32
    %174 = vector.broadcast %cst_63 : f32 to vector<32x1xf32>
    %175 = arith.divf %173, %174 : vector<32x1xf32>
    %176 = vector.broadcast %175 : vector<32x1xf32> to vector<32x128xf32>
    %177 = arith.subf %171, %176 : vector<32x128xf32>
    %178 = arith.mulf %177, %177 : vector<32x128xf32>
    %cst_64 = arith.constant dense<0.000000e+00> : vector<32xf32>
    %179 = vector.multi_reduction <add>, %178, %cst_64 [1] : vector<32x128xf32> to vector<32xf32>
    %180 = vector.shape_cast %179 : vector<32xf32> to vector<32x1xf32>
    %cst_65 = arith.constant 1.280000e+02 : f32
    %181 = vector.broadcast %cst_65 : f32 to vector<32x1xf32>
    %182 = arith.divf %180, %181 : vector<32x1xf32>
    %183 = vector.broadcast %175 : vector<32x1xf32> to vector<32x128xf32>
    %184 = arith.subf %171, %183 : vector<32x128xf32>
    %cst_66 = arith.constant 9.99999974E-6 : f32
    %185 = vector.broadcast %cst_66 : f32 to vector<32x1xf32>
    %186 = arith.addf %182, %185 : vector<32x1xf32>
    %187 = math.rsqrt %186 : vector<32x1xf32>
    %188 = vector.broadcast %187 : vector<32x1xf32> to vector<32x128xf32>
    %189 = arith.mulf %184, %188 : vector<32x128xf32>
    %c0_67 = arith.constant 0 : index
    %c0_68 = arith.constant 0 : index
    %190 = vector.load %arg10[%c0_67, %c0_68] : memref<1x128xf32, #tpu.memory_space<vmem>>, vector<1x128xf32>
    %191 = vector.broadcast %190 : vector<1x128xf32> to vector<32x128xf32>
    %192 = arith.mulf %189, %191 : vector<32x128xf32>
    %c0_69 = arith.constant 0 : index
    %c0_70 = arith.constant 0 : index
    %193 = vector.load %arg11[%c0_69, %c0_70] : memref<1x128xf32, #tpu.memory_space<vmem>>, vector<1x128xf32>
    %194 = vector.broadcast %193 : vector<1x128xf32> to vector<32x128xf32>
    %195 = arith.addf %192, %194 : vector<32x128xf32>
    %c0_71 = arith.constant 0 : index
    %c0_72 = arith.constant 0 : index
    %196 = vector.load %arg12[%c0_71, %c0_72] : memref<32x128xf32, #tpu.memory_space<vmem>>, vector<32x128xf32>
    tpu.vector_store %arg12[%c0_71, %c0_72], %195 {strides = array<i32>} : memref<32x128xf32, #tpu.memory_space<vmem>>, vector<32x128xf32>,
    return
  }
  func.func @transform_0(%arg0: i32) -> (i32, i32) {
    %c0_i32 = arith.constant 0 : i32
    %c0_i32_0 = arith.constant 0 : i32
    %c0_i32_1 = arith.constant 0 : i32
    return %c0_i32, %c0_i32_0 : i32, i32
  }
  func.func @transform_1(%arg0: i32) -> (i32, i32) {
    %c0_i32 = arith.constant 0 : i32
    %c0_i32_0 = arith.constant 0 : i32
    %c0_i32_1 = arith.constant 0 : i32
    return %c0_i32, %c0_i32_0 : i32, i32
  }
  func.func @transform_2(%arg0: i32) -> (i32, i32) {
    %c0_i32 = arith.constant 0 : i32
    %c0_i32_0 = arith.constant 0 : i32
    %c0_i32_1 = arith.constant 0 : i32
    return %c0_i32, %c0_i32_0 : i32, i32
  }
  func.func @transform_3(%arg0: i32) -> (i32, i32) {
    %c0_i32 = arith.constant 0 : i32
    %c0_i32_0 = arith.constant 0 : i32
    %c0_i32_1 = arith.constant 0 : i32
    return %c0_i32, %c0_i32_0 : i32, i32
  }
  func.func @transform_4(%arg0: i32) -> (i32, i32) {
    %c0_i32 = arith.constant 0 : i32
    %c0_i32_0 = arith.constant 0 : i32
    %c0_i32_1 = arith.constant 0 : i32
    return %c0_i32, %c0_i32_0 : i32, i32
  }
  func.func @transform_5(%arg0: i32) -> (i32, i32) {
    %c0_i32 = arith.constant 0 : i32
    %c0_i32_0 = arith.constant 0 : i32
    %c0_i32_1 = arith.constant 0 : i32
    return %c0_i32, %c0_i32_0 : i32, i32
  }
  func.func @transform_6(%arg0: i32) -> (i32, i32) {
    %c0_i32 = arith.constant 0 : i32
    %c0_i32_0 = arith.constant 0 : i32
    %c0_i32_1 = arith.constant 0 : i32
    return %c0_i32, %c0_i32_0 : i32, i32
  }
  func.func @transform_7(%arg0: i32) -> (i32, i32) {
    %c0_i32 = arith.constant 0 : i32
    %c0_i32_0 = arith.constant 0 : i32
    %c0_i32_1 = arith.constant 0 : i32
    return %c0_i32, %c0_i32_0 : i32, i32
  }
  func.func @transform_8(%arg0: i32) -> (i32, i32) {
    %c0_i32 = arith.constant 0 : i32
    %c0_i32_0 = arith.constant 0 : i32
    %c0_i32_1 = arith.constant 0 : i32
    return %c0_i32, %c0_i32_0 : i32, i32
  }
  func.func @transform_9(%arg0: i32) -> (i32, i32) {
    %c0_i32 = arith.constant 0 : i32
    %c0_i32_0 = arith.constant 0 : i32
    %c0_i32_1 = arith.constant 0 : i32
    return %c0_i32, %c0_i32_0 : i32, i32
  }
  func.func @transform_10(%arg0: i32) -> (i32, i32) {
    %c0_i32 = arith.constant 0 : i32
    %c0_i32_0 = arith.constant 0 : i32
    %c0_i32_1 = arith.constant 0 : i32
    return %c0_i32, %c0_i32_0 : i32, i32
  }
  func.func @transform_11(%arg0: i32) -> (i32, i32) {
    %c0_i32 = arith.constant 0 : i32
    %c0_i32_0 = arith.constant 0 : i32
    %c0_i32_1 = arith.constant 0 : i32
    return %c0_i32, %c0_i32_0 : i32, i32
  }
}

</mosaic_0001>

<llo_original>
// kernel: tpu_custom_call.1
$region0: #{tpu_custom_call.1}
  #allocation0 [shape = 'u32[]', space=smem, size = 0x4, offset = 0x4, fixed_abs, tag = 'smem constant byte address 0x4 - core index']
  #allocation1 [shape = 'u32[144,128]{1,0:T(1,128)}', space=vmem, size = 0x12000, scoped, tag = 'internal scratch']
  %s0 = inlined_call_operand.hbm [shape: f32[32,128], index: 0, kind: input, shape index: {}]
  %s1 = inlined_call_operand.hbm [shape: f32[128,384], index: 1, kind: input, shape index: {}]
  %s2 = inlined_call_operand.vmem [shape: f32[1,384], index: 2, kind: input, shape index: {}]
  %s3 = inlined_call_operand.hbm [shape: f32[128,128], index: 3, kind: input, shape index: {}]
  %s4 = inlined_call_operand.vmem [shape: f32[1,128], index: 4, kind: input, shape index: {}]
  %s5 = inlined_call_operand.vmem [shape: f32[1,128], index: 5, kind: input, shape index: {}]
  %s6 = inlined_call_operand.vmem [shape: f32[1,128], index: 6, kind: input, shape index: {}]
  %s7 = inlined_call_operand.hbm [shape: f32[128,256], index: 7, kind: input, shape index: {}]
  %s8 = inlined_call_operand.hbm [shape: f32[256,128], index: 8, kind: input, shape index: {}]
  %s9 = inlined_call_operand.vmem [shape: f32[1,128], index: 9, kind: input, shape index: {}]
  %s10 = inlined_call_operand.vmem [shape: f32[1,128], index: 10, kind: input, shape index: {}]
  %s11 = inlined_call_operand.hbm [shape: f32[32,128], index: 11, kind: output, shape index: {}]
  %s12 = sld [smem:[#allocation0]]
  $region74: #{tpu_custom_call.1} parent=0
    _
  %s14 = ssub.s32 1, %s12
  %s15 = scalar_select 0, %s14, %s12
  $region1: #{tpu_custom_call.1} parent=0
    #allocation2 [shape = 'u8[16384]{0}', space=vmem, size = 0x4000, scoped, tag = 'input window, operand 0, single buffered']
    #allocation3 [shape = 's32[1]{0}', space=sflag, size = 0x4, scoped, tag = 'scoped memory for tpu_custom_call.1']
    #allocation4 [shape = 's32[1]{0}', space=sflag, size = 0x4, scoped, tag = 'scoped memory for tpu_custom_call.1']
    #allocation5 [shape = 'u8[196608]{0}', space=vmem, size = 0x30000, scoped, tag = 'input window, operand 1, single buffered']
    #allocation6 [shape = 's32[1]{0}', space=sflag, size = 0x4, scoped, tag = 'scoped memory for tpu_custom_call.1']
    #allocation7 [shape = 'u8[65536]{0}', space=vmem, size = 0x10000, scoped, tag = 'input window, operand 3, single buffered']
    #allocation8 [shape = 'u8[131072]{0}', space=vmem, size = 0x20000, scoped, tag = 'input window, operand 7, single buffered']
    #allocation9 [shape = 's32[1]{0}', space=sflag, size = 0x4, scoped, tag = 'scoped memory for tpu_custom_call.1']
    #allocation10 [shape = 'u8[131072]{0}', space=vmem, size = 0x20000, scoped, tag = 'input window, operand 8, single buffered']
    #allocation11 [shape = 'u8[16384]{0}', space=vmem, size = 0x4000, scoped, tag = 'output window, operand 0, single buffered']
    %16 = vsyncpa [#allocation3], 0
    %17 = vsyncpa [#allocation6], 0
    %18 = vsyncpa [#allocation9], 0
    %19 = vsyncpa [#allocation4], 0
    // Predicated region
    $region2: #{tpu_custom_call.1} parent=1 // pred_check
      _
    $region3: #{tpu_custom_call.1} parent=1 // pred_check_branch
      %21 = sbr.rel (0) target = $region5
    $region4: #{tpu_custom_call.1} parent=1 // pred_region
      %s23 = ssub.s32 512, 512
      %24 = vsyncadd [#allocation3], %s23
      %s25 = sshll.u32 [#allocation2], 4
      %s26 = int_to_ptr.vmem [resolvable:$true] %s25
      %31 = dma.hbm_to_vmem [thread:$0]  %s0, 512, %s26, [#allocation3], 128, 128, 8
    $region5: #{tpu_custom_call.1} parent=1 // pred_fallthru
      _
    // Predicated region
    $region6: #{tpu_custom_call.1} parent=1 // pred_check
      _
    $region7: #{tpu_custom_call.1} parent=1 // pred_check_branch
      %33 = sbr.rel (0) target = $region9
    $region8: #{tpu_custom_call.1} parent=1 // pred_region
      %s35 = ssub.s32 6144, 6144
      %36 = vsyncadd [#allocation6], %s35
      %s37 = sshll.u32 [#allocation5], 4
      %s38 = int_to_ptr.vmem [resolvable:$true] %s37
      %43 = dma.hbm_to_vmem [thread:$0]  %s1, 6144, %s38, [#allocation6], 384, 384, 24
    $region9: #{tpu_custom_call.1} parent=1 // pred_fallthru
      _
    // Predicated region
    $region10: #{tpu_custom_call.1} parent=1 // pred_check
      _
    $region11: #{tpu_custom_call.1} parent=1 // pred_check_branch
      %45 = sbr.rel (0) target = $region13
    $region12: #{tpu_custom_call.1} parent=1 // pred_region
      _
    $region13: #{tpu_custom_call.1} parent=1 // pred_fallthru
      _
    // Predicated region
    $region14: #{tpu_custom_call.1} parent=1 // pred_check
      _
    $region15: #{tpu_custom_call.1} parent=1 // pred_check_branch
      %47 = sbr.rel (0) target = $region17
    $region16: #{tpu_custom_call.1} parent=1 // pred_region
      %s49 = ssub.s32 2048, 2048
      %50 = vsyncadd [#allocation6], %s49
      %s51 = sshll.u32 [#allocation7], 4
      %s52 = int_to_ptr.vmem [resolvable:$true] %s51
      %57 = dma.hbm_to_vmem [thread:$0]  %s3, 2048, %s52, [#allocation6], 128, 128, 8
    $region17: #{tpu_custom_call.1} parent=1 // pred_fallthru
      _
    // Predicated region
    $region18: #{tpu_custom_call.1} parent=1 // pred_check
      _
    $region19: #{tpu_custom_call.1} parent=1 // pred_check_branch
      %59 = sbr.rel (0) target = $region21
    $region20: #{tpu_custom_call.1} parent=1 // pred_region
      _
    $region21: #{tpu_custom_call.1} parent=1 // pred_fallthru
      _
    // Predicated region
    $region22: #{tpu_custom_call.1} parent=1 // pred_check
      _
    $region23: #{tpu_custom_call.1} parent=1 // pred_check_branch
      %61 = sbr.rel (0) target = $region25
    $region24: #{tpu_custom_call.1} parent=1 // pred_region
      _
    $region25: #{tpu_custom_call.1} parent=1 // pred_fallthru
      _
    // Predicated region
    $region26: #{tpu_custom_call.1} parent=1 // pred_check
      _
    $region27: #{tpu_custom_call.1} parent=1 // pred_check_branch
      %63 = sbr.rel (0) target = $region29
    $region28: #{tpu_custom_call.1} parent=1 // pred_region
      _
    $region29: #{tpu_custom_call.1} parent=1 // pred_fallthru
      _
    // Predicated region
    $region30: #{tpu_custom_call.1} parent=1 // pred_check
      _
    $region31: #{tpu_custom_call.1} parent=1 // pred_check_branch
      %65 = sbr.rel (0) target = $region33
    $region32: #{tpu_custom_call.1} parent=1 // pred_region
      %s67 = ssub.s32 4096, 4096
      %68 = vsyncadd [#allocation9], %s67
      %s69 = sshll.u32 [#allocation8], 4
      %s70 = int_to_ptr.vmem [resolvable:$true] %s69
      %75 = dma.hbm_to_vmem [thread:$0]  %s7, 4096, %s70, [#allocation9], 256, 256, 16
    $region33: #{tpu_custom_call.1} parent=1 // pred_fallthru
      _
    // Predicated region
    $region34: #{tpu_custom_call.1} parent=1 // pred_check
      _
    $region35: #{tpu_custom_call.1} parent=1 // pred_check_branch
      %77 = sbr.rel (0) target = $region37
    $region36: #{tpu_custom_call.1} parent=1 // pred_region
      %s79 = ssub.s32 4096, 4096
      %80 = vsyncadd [#allocation9], %s79
      %s81 = sshll.u32 [#allocation10], 4
      %s82 = int_to_ptr.vmem [resolvable:$true] %s81
      %87 = dma.hbm_to_vmem [thread:$0]  %s8, 4096, %s82, [#allocation9], 128, 128, 8
    $region37: #{tpu_custom_call.1} parent=1 // pred_fallthru
      _
    // Predicated region
    $region38: #{tpu_custom_call.1} parent=1 // pred_check
      _
    $region39: #{tpu_custom_call.1} parent=1 // pred_check_branch
      %89 = sbr.rel (0) target = $region41
    $region40: #{tpu_custom_call.1} parent=1 // pred_region
      _
    $region41: #{tpu_custom_call.1} parent=1 // pred_fallthru
      _
    // Predicated region
    $region42: #{tpu_custom_call.1} parent=1 // pred_check
      _
    $region43: #{tpu_custom_call.1} parent=1 // pred_check_branch
      %91 = sbr.rel (0) target = $region45
    $region44: #{tpu_custom_call.1} parent=1 // pred_region
      _
    $region45: #{tpu_custom_call.1} parent=1 // pred_fallthru
      _
    // Predicated region
    $region46: #{tpu_custom_call.1} parent=1 // pred_check
      _
    $region47: #{tpu_custom_call.1} parent=1 // pred_check_branch
      %93 = sbr.rel (0) target = $region49
    $region48: #{tpu_custom_call.1} parent=1 // pred_region
      %94 = dma.done [#allocation3], 512
    $region49: #{tpu_custom_call.1} parent=1 // pred_fallthru
      _
    // Predicated region
    $region50: #{tpu_custom_call.1} parent=1 // pred_check
      _
    $region51: #{tpu_custom_call.1} parent=1 // pred_check_branch
      %96 = sbr.rel (0) target = $region53
    $region52: #{tpu_custom_call.1} parent=1 // pred_region
      %97 = dma.done [#allocation6], 6144
    $region53: #{tpu_custom_call.1} parent=1 // pred_fallthru
      _
    // Predicated region
    $region54: #{tpu_custom_call.1} parent=1 // pred_check
      _
    $region55: #{tpu_custom_call.1} parent=1 // pred_check_branch
      %99 = sbr.rel (0) target = $region57
    $region56: #{tpu_custom_call.1} parent=1 // pred_region
      %100 = dma.done [#allocation6], 2048
    $region57: #{tpu_custom_call.1} parent=1 // pred_fallthru
      _
    // Predicated region
    $region58: #{tpu_custom_call.1} parent=1 // pred_check
      _
    $region59: #{tpu_custom_call.1} parent=1 // pred_check_branch
      %102 = sbr.rel (0) target = $region61
    $region60: #{tpu_custom_call.1} parent=1 // pred_region
      %103 = dma.done [#allocation9], 4096
    $region61: #{tpu_custom_call.1} parent=1 // pred_fallthru
      _
    // Predicated region
    $region62: #{tpu_custom_call.1} parent=1 // pred_check
      _
    $region63: #{tpu_custom_call.1} parent=1 // pred_check_branch
      %105 = sbr.rel (0) target = $region65
    $region64: #{tpu_custom_call.1} parent=1 // pred_region
      %106 = dma.done [#allocation9], 4096
    $region65: #{tpu_custom_call.1} parent=1 // pred_fallthru
      _
    %v107 = vld [vmem:[#allocation2] sm:$0xff]
    %v108 = vld [vmem:[#allocation2 + $0x8] sm:$0xff]
    %v109 = vld [vmem:[#allocation2 + $0x10] sm:$0xff]
    %v110 = vld [vmem:[#allocation2 + $0x18] sm:$0xff]
    %v111 = vld [vmem:[#allocation5] sm:$0xff]
    %v112 = vld [vmem:[#allocation5 + $0x8] sm:$0xff]
    %v113 = vld [vmem:[#allocation5 + $0x10] sm:$0xff]
    %v114 = vld [vmem:[#allocation5 + $0x18] sm:$0xff]
    %v115 = vld [vmem:[#allocation5 + $0x20] sm:$0xff]
    %v116 = vld [vmem:[#allocation5 + $0x28] sm:$0xff]
    %v117 = vld [vmem:[#allocation5 + $0x30] sm:$0xff]
    %v118 = vld [vmem:[#allocation5 + $0x38] sm:$0xff]
    %v119 = vld [vmem:[#allocation5 + $0x40] sm:$0xff]
    %v120 = vld [vmem:[#allocation5 + $0x48] sm:$0xff]
    %v121 = vld [vmem:[#allocation5 + $0x50] sm:$0xff]
    %v122 = vld [vmem:[#allocation5 + $0x58] sm:$0xff]
    %v123 = vld [vmem:[#allocation5 + $0x60] sm:$0xff]
    %v124 = vld [vmem:[#allocation5 + $0x68] sm:$0xff]
    %v125 = vld [vmem:[#allocation5 + $0x70] sm:$0xff]
    %v126 = vld [vmem:[#allocation5 + $0x78] sm:$0xff]
    %v127 = vld [vmem:[#allocation5 + $0x80] sm:$0xff]
    %v128 = vld [vmem:[#allocation5 + $0x88] sm:$0xff]
    %v129 = vld [vmem:[#allocation5 + $0x90] sm:$0xff]
    %v130 = vld [vmem:[#allocation5 + $0x98] sm:$0xff]
    %v131 = vld [vmem:[#allocation5 + $0xa0] sm:$0xff]
    %v132 = vld [vmem:[#allocation5 + $0xa8] sm:$0xff]
    %v133 = vld [vmem:[#allocation5 + $0xb0] sm:$0xff]
    %v134 = vld [vmem:[#allocation5 + $0xb8] sm:$0xff]
    %v135 = vld [vmem:[#allocation5 + $0xc0] sm:$0xff]
    %v136 = vld [vmem:[#allocation5 + $0xc8] sm:$0xff]
    %v137 = vld [vmem:[#allocation5 + $0xd0] sm:$0xff]
    %v138 = vld [vmem:[#allocation5 + $0xd8] sm:$0xff]
    %v139 = vld [vmem:[#allocation5 + $0xe0] sm:$0xff]
    %v140 = vld [vmem:[#allocation5 + $0xe8] sm:$0xff]
    %v141 = vld [vmem:[#allocation5 + $0xf0] sm:$0xff]
    %v142 = vld [vmem:[#allocation5 + $0xf8] sm:$0xff]
    %v143 = vld [vmem:[#allocation5 + $0x100] sm:$0xff]
    %v144 = vld [vmem:[#allocation5 + $0x108] sm:$0xff]
    %v145 = vld [vmem:[#allocation5 + $0x110] sm:$0xff]
    %v146 = vld [vmem:[#allocation5 + $0x118] sm:$0xff]
    %v147 = vld [vmem:[#allocation5 + $0x120] sm:$0xff]
    %v148 = vld [vmem:[#allocation5 + $0x128] sm:$0xff]
    %v149 = vld [vmem:[#allocation5 + $0x130] sm:$0xff]
    %v150 = vld [vmem:[#allocation5 + $0x138] sm:$0xff]
    %v151 = vld [vmem:[#allocation5 + $0x140] sm:$0xff]
    %v152 = vld [vmem:[#allocation5 + $0x148] sm:$0xff]
    %v153 = vld [vmem:[#allocation5 + $0x150] sm:$0xff]
    %v154 = vld [vmem:[#allocation5 + $0x158] sm:$0xff]
    %v155 = vld [vmem:[#allocation5 + $0x160] sm:$0xff]
    %v156 = vld [vmem:[#allocation5 + $0x168] sm:$0xff]
    %v157 = vld [vmem:[#allocation5 + $0x170] sm:$0xff]
    %v158 = vld [vmem:[#allocation5 + $0x178] sm:$0xff]
    %v159 = vld [vmem:[%s2] sm:$0x7]
    %v161 = vlaneseq
    %v162 = vshrl.u32 %v161, 7
    %v163 = vsub.s32 0, %v162
    %v164 = vrot.slane %v159, %v163
    %v165 = vlaneseq
    %v166 = vshrl.u32 %v165, 7
    %v167 = vsub.s32 1, %v166
    %v168 = vrot.slane %v159, %v167
    %v169 = vlaneseq
    %v170 = vshrl.u32 %v169, 7
    %v171 = vsub.s32 2, %v170
    %v172 = vrot.slane %v159, %v171
    %176 = vmatprep.subr.mxu0 %v112
    %177 = vmatpush1.msra.mxu0 %v111
    %178 = vmatprep.subr.mxu0 %v115
    %179 = vmatpush1.msra.mxu0 %v114
    %180 = vmatprep.subr.mxu0 %v118
    %181 = vmatpush1.msra.mxu0 %v117
    %182 = vmatprep.subr.mxu0 %v121
    %183 = vmatpush1.msra.mxu0 %v120
    %184 = vmatprep.subr.mxu0 %v124
    %185 = vmatpush1.msra.mxu0 %v123
    %186 = vmatprep.subr.mxu0 %v127
    %187 = vmatpush1.msra.mxu0 %v126
    %188 = vmatprep.subr.mxu0 %v130
    %189 = vmatpush1.msra.mxu0 %v129
    %190 = vmatprep.subr.mxu0 %v133
    %191 = vmatpush1.msra.mxu0 %v132
    %192 = vmatprep.subr.mxu0 %v136
    %193 = vmatpush1.msra.mxu0 %v135
    %194 = vmatprep.subr.mxu0 %v139
    %195 = vmatpush1.msra.mxu0 %v138
    %196 = vmatprep.subr.mxu0 %v142
    %197 = vmatpush1.msra.mxu0 %v141
    %198 = vmatprep.subr.mxu0 %v145
    %199 = vmatpush1.msra.mxu0 %v144
    %200 = vmatprep.subr.mxu0 %v148
    %201 = vmatpush1.msra.mxu0 %v147
    %202 = vmatprep.subr.mxu0 %v151
    %203 = vmatpush1.msra.mxu0 %v150
    %204 = vmatprep.subr.mxu0 %v154
    %205 = vmatpush1.msra.mxu0 %v153
    %206 = vmatprep.subr.mxu0 %v157
    %207 = vmatpush1.msra.mxu0 %v156
    %208 = vmatprep.subr.mxu0 0.0
    %209 = vmatpush1.msra.mxu0 0.0
    %210 = vmatprep.subr.mxu0 0.0
    %211 = vmatpush1.msra.mxu0 0.0
    %212 = vmatprep.subr.mxu0 0.0
    %213 = vmatpush1.msra.mxu0 0.0
    %214 = vmatprep.subr.mxu0 0.0
    %215 = vmatpush1.msra.mxu0 0.0
    %216 = vmatprep.subr.mxu0 0.0
    %217 = vmatpush1.msra.mxu0 0.0
    %218 = vmatprep.subr.mxu0 0.0
    %219 = vmatpush1.msra.mxu0 0.0
    %220 = vmatprep.subr.mxu0 0.0
    %221 = vmatpush1.msra.mxu0 0.0
    %222 = vmatprep.subr.mxu0 0.0
    %223 = vmatpush1.msra.mxu0 0.0
    %224 = vmatprep.subr.mxu0 0.0
    %225 = vmatpush1.msra.mxu0 0.0
    %226 = vmatprep.subr.mxu0 0.0
    %227 = vmatpush1.msra.mxu0 0.0
    %228 = vmatprep.subr.mxu0 0.0
    %229 = vmatpush1.msra.mxu0 0.0
    %230 = vmatprep.subr.mxu0 0.0
    %231 = vmatpush1.msra.mxu0 0.0
    %232 = vmatprep.subr.mxu0 0.0
    %233 = vmatpush1.msra.mxu0 0.0
    %234 = vmatprep.subr.mxu0 0.0
    %235 = vmatpush1.msra.mxu0 0.0
    %236 = vmatprep.subr.mxu0 0.0
    %237 = vmatpush1.msra.mxu0 0.0
    %238 = vmatprep.subr.mxu0 0.0
    %239 = vmatpush1.msra.mxu0 0.0
    %240 = vmatprep.mubr.f32.mxu0 0.0
    %241 = vmatmul.mubr.f32.gmra.mrb[0].mxu0 %v107
    %v242 = vpop.f32.mrb[0].mxu0
    %v243 = vadd.f32 %v164, %v242
    %v244 = vpop.f32.mrb[0].mxu0
    %v245 = vadd.f32 %v168, %v244
    %246 = vmatprep.mubr.f32.mxu0 0.0
    %247 = vmatmul.mubr.f32.gmra.mrb[0].mxu0 %v108
    %v248 = vpop.f32.mrb[0].mxu0
    %v249 = vadd.f32 %v164, %v248
    %v250 = vpop.f32.mrb[0].mxu0
    %v251 = vadd.f32 %v168, %v250
    %252 = vmatprep.mubr.f32.mxu0 0.0
    %253 = vmatmul.mubr.f32.gmra.mrb[0].mxu0 %v109
    %v254 = vpop.f32.mrb[0].mxu0
    %v255 = vadd.f32 %v164, %v254
    %v256 = vpop.f32.mrb[0].mxu0
    %v257 = vadd.f32 %v168, %v256
    %258 = vmatprep.mubr.f32.mxu0 0.0
    %259 = vmatmul.mubr.f32.gmra.mrb[0].mxu0 %v110
    %v260 = vpop.f32.mrb[0].mxu0
    %v261 = vadd.f32 %v164, %v260
    %v262 = vpop.f32.mrb[0].mxu0
    %v263 = vadd.f32 %v168, %v262
    %264 = vdwg.mxu0
    %265 = vmatprep.subr.mxu0 0.0
    %266 = vmatpush1.msra.mxu0 %v113
    %267 = vmatprep.subr.mxu0 0.0
    %268 = vmatpush1.msra.mxu0 %v116
    %269 = vmatprep.subr.mxu0 0.0
    %270 = vmatpush1.msra.mxu0 %v119
    %271 = vmatprep.subr.mxu0 0.0
    %272 = vmatpush1.msra.mxu0 %v122
    %273 = vmatprep.subr.mxu0 0.0
    %274 = vmatpush1.msra.mxu0 %v125
    %275 = vmatprep.subr.mxu0 0.0
    %276 = vmatpush1.msra.mxu0 %v128
    %277 = vmatprep.subr.mxu0 0.0
    %278 = vmatpush1.msra.mxu0 %v131
    %279 = vmatprep.subr.mxu0 0.0
    %280 = vmatpush1.msra.mxu0 %v134
    %281 = vmatprep.subr.mxu0 0.0
    %282 = vmatpush1.msra.mxu0 %v137
    %283 = vmatprep.subr.mxu0 0.0
    %284 = vmatpush1.msra.mxu0 %v140
    %285 = vmatprep.subr.mxu0 0.0
    %286 = vmatpush1.msra.mxu0 %v143
    %287 = vmatprep.subr.mxu0 0.0
    %288 = vmatpush1.msra.mxu0 %v146
    %289 = vmatprep.subr.mxu0 0.0
    %290 = vmatpush1.msra.mxu0 %v149
    %291 = vmatprep.subr.mxu0 0.0
    %292 = vmatpush1.msra.mxu0 %v152
    %293 = vmatprep.subr.mxu0 0.0
    %294 = vmatpush1.msra.mxu0 %v155
    %295 = vmatprep.subr.mxu0 0.0
    %296 = vmatpush1.msra.mxu0 %v158
    %297 = vmatprep.subr.mxu0 0.0
    %298 = vmatpush1.msra.mxu0 0.0
    %299 = vmatprep.subr.mxu0 0.0
    %300 = vmatpush1.msra.mxu0 0.0
    %301 = vmatprep.subr.mxu0 0.0
    %302 = vmatpush1.msra.mxu0 0.0
    %303 = vmatprep.subr.mxu0 0.0
    %304 = vmatpush1.msra.mxu0 0.0
    %305 = vmatprep.subr.mxu0 0.0
    %306 = vmatpush1.msra.mxu0 0.0
    %307 = vmatprep.subr.mxu0 0.0
    %308 = vmatpush1.msra.mxu0 0.0
    %309 = vmatprep.subr.mxu0 0.0
    %310 = vmatpush1.msra.mxu0 0.0
    %311 = vmatprep.subr.mxu0 0.0
    %312 = vmatpush1.msra.mxu0 0.0
    %313 = vmatprep.subr.mxu0 0.0
    %314 = vmatpush1.msra.mxu0 0.0
    %315 = vmatprep.subr.mxu0 0.0
    %316 = vmatpush1.msra.mxu0 0.0
    %317 = vmatprep.subr.mxu0 0.0
    %318 = vmatpush1.msra.mxu0 0.0
    %319 = vmatprep.subr.mxu0 0.0
    %320 = vmatpush1.msra.mxu0 0.0
    %321 = vmatprep.subr.mxu0 0.0
    %322 = vmatpush1.msra.mxu0 0.0
    %323 = vmatprep.subr.mxu0 0.0
    %324 = vmatpush1.msra.mxu0 0.0
    %325 = vmatprep.subr.mxu0 0.0
    %326 = vmatpush1.msra.mxu0 0.0
    %327 = vmatprep.subr.mxu0 0.0
    %328 = vmatpush1.msra.mxu0 0.0
    %329 = vmatprep.mubr.f32.mxu0 0.0
    %330 = vmatmul.mubr.f32.gmra.mrb[0].mxu0 %v107
    %v331 = vpop.f32.mrb[0].mxu0
    %v332 = vadd.f32 %v172, %v331
    %v333 = vpop.f32.mrb[0].mxu0
    %334 = vmatprep.mubr.f32.mxu0 0.0
    %335 = vmatmul.mubr.f32.gmra.mrb[0].mxu0 %v108
    %v336 = vpop.f32.mrb[0].mxu0
    %v337 = vadd.f32 %v172, %v336
    %v338 = vpop.f32.mrb[0].mxu0
    %339 = vmatprep.mubr.f32.mxu0 0.0
    %340 = vmatmul.mubr.f32.gmra.mrb[0].mxu0 %v109
    %v341 = vpop.f32.mrb[0].mxu0
    %v342 = vadd.f32 %v172, %v341
    %v343 = vpop.f32.mrb[0].mxu0
    %344 = vmatprep.mubr.f32.mxu0 0.0
    %345 = vmatmul.mubr.f32.gmra.mrb[0].mxu0 %v110
    %v346 = vpop.f32.mrb[0].mxu0
    %v347 = vadd.f32 %v172, %v346
    %v348 = vpop.f32.mrb[0].mxu0
    %349 = vdwg.mxu0
    %v350 = vlaneseq
    %v351 = vshrl.u32 %v350, 7
    %v352 = vadd.s32 %v351, 8
    %v353 = vadd.s32 %v351, 16
    %v354 = vadd.s32 %v351, 24
    %vm355 = vcmp.lt.s32.totalorder %v351, 0
    %v356 = vsub.s32 0, %v351
    %v357 = vsel %vm355, %v356, %v351
    %v358 = vshrl.u32 %v357, 1
    %v359 = vand.u32 %v357, 1
    %v360 = vsub.s32 0, %v359
    %v361 = vsel %vm355, %v360, %v359
    %vm362 = vcmp.lt.s32.totalorder %v352, 0
    %v363 = vsub.s32 0, %v352
    %v364 = vsel %vm362, %v363, %v352
    %v365 = vshrl.u32 %v364, 1
    %v366 = vand.u32 %v364, 1
    %v367 = vsub.s32 0, %v366
    %v368 = vsel %vm362, %v367, %v366
    %vm369 = vcmp.lt.s32.totalorder %v353, 0
    %v370 = vsub.s32 0, %v353
    %v371 = vsel %vm369, %v370, %v353
    %v372 = vshrl.u32 %v371, 1
    %v373 = vand.u32 %v371, 1
    %v374 = vsub.s32 0, %v373
    %v375 = vsel %vm369, %v374, %v373
    %vm376 = vcmp.lt.s32.totalorder %v354, 0
    %v377 = vsub.s32 0, %v354
    %v378 = vsel %vm376, %v377, %v354
    %v379 = vshrl.u32 %v378, 1
    %v380 = vand.u32 %v378, 1
    %v381 = vsub.s32 0, %v380
    %v382 = vsel %vm376, %v381, %v380
    %vm383 = vcmp.ne.s32.totalorder %v361, 0
    %vm384 = vcmp.ne.s32.totalorder %v368, 0
    %vm385 = vcmp.ne.s32.totalorder %v375, 0
    %vm386 = vcmp.ne.s32.totalorder %v382, 0
    %vm387 = vcmp.lt.s32.totalorder %v361, 0
    %vm388 = vcmp.lt.s32.totalorder %v368, 0
    %vm389 = vcmp.lt.s32.totalorder %v375, 0
    %vm390 = vcmp.lt.s32.totalorder %v382, 0
    %vm391 = vmand %vm387, %vm383
    %vm392 = vmand %vm388, %vm384
    %vm393 = vmand %vm389, %vm385
    %vm394 = vmand %vm390, %vm386
    %v395 = vadd.s32 %v361, 2
    %v396 = vadd.s32 %v368, 2
    %v397 = vadd.s32 %v375, 2
    %v398 = vadd.s32 %v382, 2
    %v399 = vsel %vm391, %v395, %v361
    %v400 = vsel %vm392, %v396, %v368
    %v401 = vsel %vm393, %v397, %v375
    %v402 = vsel %vm394, %v398, %v382
    %v403 = vlaneseq
    %v404 = vand.u32 %v403, 127
    %vm405 = vcmp.lt.s32.totalorder %v404, 0
    %v406 = vsub.s32 0, %v404
    %v407 = vsel %vm405, %v406, %v404
    %v408 = vshrl.u32 %v407, 1
    %v409 = vand.u32 %v407, 1
    %v410 = vsub.s32 0, %v409
    %v411 = vsel %vm405, %v410, %v409
    %vm412 = vcmp.ne.s32.totalorder %v411, 0
    %vm413 = vcmp.lt.s32.totalorder %v411, 0
    %vm414 = vmand %vm413, %vm412
    %v415 = vadd.s32 %v411, 2
    %v416 = vsel %vm414, %v415, %v411
    %vm417 = vcmp.eq.s32.totalorder %v399, %v416
    %vm418 = vcmp.eq.s32.totalorder %v400, %v416
    %vm419 = vcmp.eq.s32.totalorder %v401, %v416
    %vm420 = vcmp.eq.s32.totalorder %v402, %v416
    %v421 = vld [vmem:[#allocation7] sm:$0xff]
    %v422 = vld [vmem:[#allocation7 + $0x8] sm:$0xff]
    %v423 = vld [vmem:[#allocation7 + $0x10] sm:$0xff]
    %v424 = vld [vmem:[#allocation7 + $0x18] sm:$0xff]
    %v425 = vld [vmem:[#allocation7 + $0x20] sm:$0xff]
    %v426 = vld [vmem:[#allocation7 + $0x28] sm:$0xff]
    %v427 = vld [vmem:[#allocation7 + $0x30] sm:$0xff]
    %v428 = vld [vmem:[#allocation7 + $0x38] sm:$0xff]
    %v429 = vld [vmem:[#allocation7 + $0x40] sm:$0xff]
    %v430 = vld [vmem:[#allocation7 + $0x48] sm:$0xff]
    %v431 = vld [vmem:[#allocation7 + $0x50] sm:$0xff]
    %v432 = vld [vmem:[#allocation7 + $0x58] sm:$0xff]
    %v433 = vld [vmem:[#allocation7 + $0x60] sm:$0xff]
    %v434 = vld [vmem:[#allocation7 + $0x68] sm:$0xff]
    %v435 = vld [vmem:[#allocation7 + $0x70] sm:$0xff]
    %v436 = vld [vmem:[#allocation7 + $0x78] sm:$0xff]
    %vm437 = vcmask 261120
    %v439 = vsel %vm437, %v243, 0
    %v442 = vsel %vm437, %v249, 0
    %v445 = vsel %vm437, %v255, 0
    %v448 = vsel %vm437, %v261, 0
    %v451 = vsel %vm437, %v245, 0
    %v454 = vsel %vm437, %v251, 0
    %v457 = vsel %vm437, %v257, 0
    %v460 = vsel %vm437, %v263, 0
    %462 = vmatprep.subr.mxu0 0.0
    %463 = vmatpush1.xpose.msra.mxu0 %v451
    %464 = vmatprep.subr.mxu0 0.0
    %465 = vmatpush1.xpose.msra.mxu0 %v454
    %466 = vmatprep.subr.mxu0 0.0
    %467 = vmatpush1.xpose.msra.mxu0 %v457
    %468 = vmatprep.subr.mxu0 0.0
    %469 = vmatpush1.xpose.msra.mxu0 %v460
    %470 = vmatprep.subr.mxu0 0.0
    %471 = vmatpush1.xpose.msra.mxu0 0.0
    %472 = vmatprep.subr.mxu0 0.0
    %473 = vmatpush1.xpose.msra.mxu0 0.0
    %474 = vmatprep.subr.mxu0 0.0
    %475 = vmatpush1.xpose.msra.mxu0 0.0
    %476 = vmatprep.subr.mxu0 0.0
    %477 = vmatpush1.xpose.msra.mxu0 0.0
    %478 = vmatprep.subr.mxu0 0.0
    %479 = vmatpush1.xpose.msra.mxu0 0.0
    %480 = vmatprep.subr.mxu0 0.0
    %481 = vmatpush1.xpose.msra.mxu0 0.0
    %482 = vmatprep.subr.mxu0 0.0
    %483 = vmatpush1.xpose.msra.mxu0 0.0
    %484 = vmatprep.subr.mxu0 0.0
    %485 = vmatpush1.xpose.msra.mxu0 0.0
    %486 = vmatprep.subr.mxu0 0.0
    %487 = vmatpush1.xpose.msra.mxu0 0.0
    %488 = vmatprep.subr.mxu0 0.0
    %489 = vmatpush1.xpose.msra.mxu0 0.0
    %490 = vmatprep.subr.mxu0 0.0
    %491 = vmatpush1.xpose.msra.mxu0 0.0
    %492 = vmatprep.subr.mxu0 0.0
    %493 = vmatpush1.xpose.msra.mxu0 0.0
    %494 = vmatprep.subr.mxu0 0.0
    %495 = vmatpush1.xpose.msra.mxu0 0.0
    %496 = vmatprep.subr.mxu0 0.0
    %497 = vmatpush1.xpose.msra.mxu0 0.0
    %498 = vmatprep.subr.mxu0 0.0
    %499 = vmatpush1.xpose.msra.mxu0 0.0
    %500 = vmatprep.subr.mxu0 0.0
    %501 = vmatpush1.xpose.msra.mxu0 0.0
    %502 = vmatprep.subr.mxu0 0.0
    %503 = vmatpush1.xpose.msra.mxu0 0.0
    %504 = vmatprep.subr.mxu0 0.0
    %505 = vmatpush1.xpose.msra.mxu0 0.0
    %506 = vmatprep.subr.mxu0 0.0
    %507 = vmatpush1.xpose.msra.mxu0 0.0
    %508 = vmatprep.subr.mxu0 0.0
    %509 = vmatpush1.xpose.msra.mxu0 0.0
    %510 = vmatprep.subr.mxu0 0.0
    %511 = vmatpush1.xpose.msra.mxu0 0.0
    %512 = vmatprep.subr.mxu0 0.0
    %513 = vmatpush1.xpose.msra.mxu0 0.0
    %514 = vmatprep.subr.mxu0 0.0
    %515 = vmatpush1.xpose.msra.mxu0 0.0
    %516 = vmatprep.subr.mxu0 0.0
    %517 = vmatpush1.xpose.msra.mxu0 0.0
    %518 = vmatprep.subr.mxu0 0.0
    %519 = vmatpush1.xpose.msra.mxu0 0.0
    %520 = vmatprep.subr.mxu0 0.0
    %521 = vmatpush1.xpose.msra.mxu0 0.0
    %522 = vmatprep.subr.mxu0 0.0
    %523 = vmatpush1.xpose.msra.mxu0 0.0
    %524 = vmatprep.subr.mxu0 0.0
    %525 = vmatpush1.xpose.msra.mxu0 0.0
    %526 = vmatprep.mubr.f32.mxu0 0.0
    %527 = vmatmul.mubr.f32.gmra.mrb[0].mxu0 %v439
    %v528 = vpop.f32.mrb[0].mxu0
    %v529 = vadd.f32 0.0, %v528
    %v530 = vpop.f32.mrb[0].mxu0
    %531 = vmatprep.mubr.f32.mxu0 0.0
    %532 = vmatmul.mubr.f32.gmra.mrb[0].mxu0 %v442
    %v533 = vpop.f32.mrb[0].mxu0
    %v534 = vadd.f32 0.0, %v533
    %v535 = vpop.f32.mrb[0].mxu0
    %536 = vmatprep.mubr.f32.mxu0 0.0
    %537 = vmatmul.mubr.f32.gmra.mrb[0].mxu0 %v445
    %v538 = vpop.f32.mrb[0].mxu0
    %v539 = vadd.f32 0.0, %v538
    %v540 = vpop.f32.mrb[0].mxu0
    %541 = vmatprep.mubr.f32.mxu0 0.0
    %542 = vmatmul.mubr.f32.gmra.mrb[0].mxu0 %v448
    %v543 = vpop.f32.mrb[0].mxu0
    %v544 = vadd.f32 0.0, %v543
    %v545 = vpop.f32.mrb[0].mxu0
    %546 = vdwg.mxu0
    %v547 = vsel %vm417, %v529, -1e+30
    %v548 = vsel %vm418, %v534, -1e+30
    %v549 = vsel %vm419, %v539, -1e+30
    %v550 = vsel %vm420, %v544, -1e+30
    %v551 = vsel %vm437, %v547, -inf
    %552 = vmax.xlane.f32.xlu0 %v551
    %v553 = vpop.xlane.xlu0 %552
    %v554 = vsel %vm437, %v548, -inf
    %555 = vmax.xlane.f32.xlu0 %v554
    %v556 = vpop.xlane.xlu0 %555
    %v557 = vsel %vm437, %v549, -inf
    %558 = vmax.xlane.f32.xlu0 %v557
    %v559 = vpop.xlane.xlu0 %558
    %v560 = vsel %vm437, %v550, -inf
    %561 = vmax.xlane.f32.xlu0 %v560
    %v562 = vpop.xlane.xlu0 %561
    %v563 = vsub.f32 %v547, %v553
    %v564 = vsub.f32 %v548, %v556
    %v565 = vsub.f32 %v549, %v559
    %v566 = vsub.f32 %v550, %v562
    %v567 = vmul.f32 %v563, 1.442695
    %v568 = vpow.pop %v567
    %v569 = vmul.f32 %v564, 1.442695
    %v570 = vpow.pop %v569
    %v571 = vmul.f32 %v565, 1.442695
    %v572 = vpow.pop %v571
    %v573 = vmul.f32 %v566, 1.442695
    %v574 = vpow.pop %v573
    %v575 = vsel %vm437, %v568, 0.0
    %576 = vadd.xlane.f32.xlu0 %v575
    %v577 = vpop.xlane.xlu0 %576
    %v578 = vsel %vm437, %v570, 0.0
    %579 = vadd.xlane.f32.xlu0 %v578
    %v580 = vpop.xlane.xlu0 %579
    %v581 = vsel %vm437, %v572, 0.0
    %582 = vadd.xlane.f32.xlu0 %v581
    %v583 = vpop.xlane.xlu0 %582
    %v584 = vsel %vm437, %v574, 0.0
    %585 = vadd.xlane.f32.xlu0 %v584
    %v586 = vpop.xlane.xlu0 %585
    %v587 = vrcp.pop %v577
    %v588 = vrcp.pop %v580
    %v589 = vrcp.pop %v583
    %v590 = vrcp.pop %v586
    %v591 = vmul.f32 %v568, %v587
    %v592 = vmul.f32 %v570, %v588
    %v593 = vmul.f32 %v572, %v589
    %v594 = vmul.f32 %v574, %v590
    %v596 = vsel %vm437, %v591, 0
    %v599 = vsel %vm437, %v592, 0
    %v602 = vsel %vm437, %v593, 0
    %v605 = vsel %vm437, %v594, 0
    %607 = vmatprep.subr.mxu0 0.0
    %608 = vmatpush1.msra.mxu0 %v332
    %609 = vmatprep.subr.mxu0 0.0
    %610 = vmatpush1.msra.mxu0 %v337
    %611 = vmatprep.subr.mxu0 0.0
    %612 = vmatpush1.msra.mxu0 %v342
    %613 = vmatprep.subr.mxu0 0.0
    %614 = vmatpush1.msra.mxu0 %v347
    %615 = vmatprep.subr.mxu0 0.0
    %616 = vmatpush1.msra.mxu0 0.0
    %617 = vmatprep.subr.mxu0 0.0
    %618 = vmatpush1.msra.mxu0 0.0
    %619 = vmatprep.subr.mxu0 0.0
    %620 = vmatpush1.msra.mxu0 0.0
    %621 = vmatprep.subr.mxu0 0.0
    %622 = vmatpush1.msra.mxu0 0.0
    %623 = vmatprep.subr.mxu0 0.0
    %624 = vmatpush1.msra.mxu0 0.0
    %625 = vmatprep.subr.mxu0 0.0
    %626 = vmatpush1.msra.mxu0 0.0
    %627 = vmatprep.subr.mxu0 0.0
    %628 = vmatpush1.msra.mxu0 0.0
    %629 = vmatprep.subr.mxu0 0.0
    %630 = vmatpush1.msra.mxu0 0.0
    %631 = vmatprep.subr.mxu0 0.0
    %632 = vmatpush1.msra.mxu0 0.0
    %633 = vmatprep.subr.mxu0 0.0
    %634 = vmatpush1.msra.mxu0 0.0
    %635 = vmatprep.subr.mxu0 0.0
    %636 = vmatpush1.msra.mxu0 0.0
    %637 = vmatprep.subr.mxu0 0.0
    %638 = vmatpush1.msra.mxu0 0.0
    %639 = vmatprep.subr.mxu0 0.0
    %640 = vmatpush1.msra.mxu0 0.0
    %641 = vmatprep.subr.mxu0 0.0
    %642 = vmatpush1.msra.mxu0 0.0
    %643 = vmatprep.subr.mxu0 0.0
    %644 = vmatpush1.msra.mxu0 0.0
    %645 = vmatprep.subr.mxu0 0.0
    %646 = vmatpush1.msra.mxu0 0.0
    %647 = vmatprep.subr.mxu0 0.0
    %648 = vmatpush1.msra.mxu0 0.0
    %649 = vmatprep.subr.mxu0 0.0
    %650 = vmatpush1.msra.mxu0 0.0
    %651 = vmatprep.subr.mxu0 0.0
    %652 = vmatpush1.msra.mxu0 0.0
    %653 = vmatprep.subr.mxu0 0.0
    %654 = vmatpush1.msra.mxu0 0.0
    %655 = vmatprep.subr.mxu0 0.0
    %656 = vmatpush1.msra.mxu0 0.0
    %657 = vmatprep.subr.mxu0 0.0
    %658 = vmatpush1.msra.mxu0 0.0
    %659 = vmatprep.subr.mxu0 0.0
    %660 = vmatpush1.msra.mxu0 0.0
    %661 = vmatprep.subr.mxu0 0.0
    %662 = vmatpush1.msra.mxu0 0.0
    %663 = vmatprep.subr.mxu0 0.0
    %664 = vmatpush1.msra.mxu0 0.0
    %665 = vmatprep.subr.mxu0 0.0
    %666 = vmatpush1.msra.mxu0 0.0
    %667 = vmatprep.subr.mxu0 0.0
    %668 = vmatpush1.msra.mxu0 0.0
    %669 = vmatprep.subr.mxu0 0.0
    %670 = vmatpush1.msra.mxu0 0.0
    %671 = vmatprep.mubr.f32.mxu0 0.0
    %672 = vmatmul.mubr.f32.gmra.mrb[0].mxu0 %v596
    %v673 = vpop.f32.mrb[0].mxu0
    %v674 = vadd.f32 0.0, %v673
    %v675 = vpop.f32.mrb[0].mxu0
    %676 = vmatprep.mubr.f32.mxu0 0.0
    %677 = vmatmul.mubr.f32.gmra.mrb[0].mxu0 %v599
    %v678 = vpop.f32.mrb[0].mxu0
    %v679 = vadd.f32 0.0, %v678
    %v680 = vpop.f32.mrb[0].mxu0
    %681 = vmatprep.mubr.f32.mxu0 0.0
    %682 = vmatmul.mubr.f32.gmra.mrb[0].mxu0 %v602
    %v683 = vpop.f32.mrb[0].mxu0
    %v684 = vadd.f32 0.0, %v683
    %v685 = vpop.f32.mrb[0].mxu0
    %686 = vmatprep.mubr.f32.mxu0 0.0
    %687 = vmatmul.mubr.f32.gmra.mrb[0].mxu0 %v605
    %v688 = vpop.f32.mrb[0].mxu0
    %v689 = vadd.f32 0.0, %v688
    %v690 = vpop.f32.mrb[0].mxu0
    %691 = vdwg.mxu0
    %692 = vrot.lane.b32.xlu0 %v243, 96
    %v693 = vpop.permute.xlu0 %692
    %694 = vrot.lane.b32.xlu0 %v249, 96
    %v695 = vpop.permute.xlu0 %694
    %696 = vrot.lane.b32.xlu0 %v255, 96
    %v697 = vpop.permute.xlu0 %696
    %698 = vrot.lane.b32.xlu0 %v261, 96
    %v699 = vpop.permute.xlu0 %698
    %700 = vrot.lane.b32.xlu0 %v245, 96
    %v701 = vpop.permute.xlu0 %700
    %702 = vrot.lane.b32.xlu0 %v251, 96
    %v703 = vpop.permute.xlu0 %702
    %704 = vrot.lane.b32.xlu0 %v257, 96
    %v705 = vpop.permute.xlu0 %704
    %706 = vrot.lane.b32.xlu0 %v263, 96
    %v707 = vpop.permute.xlu0 %706
    %v708 = vsel %vm437, %v693, 0
    %v710 = vsel %vm437, %v695, 0
    %v712 = vsel %vm437, %v697, 0
    %v714 = vsel %vm437, %v699, 0
    %v716 = vsel %vm437, %v701, 0
    %v718 = vsel %vm437, %v703, 0
    %v720 = vsel %vm437, %v705, 0
    %v722 = vsel %vm437, %v707, 0
    %724 = vmatprep.subr.mxu0 0.0
    %725 = vmatpush1.xpose.msra.mxu0 %v716
    %726 = vmatprep.subr.mxu0 0.0
    %727 = vmatpush1.xpose.msra.mxu0 %v718
    %728 = vmatprep.subr.mxu0 0.0
    %729 = vmatpush1.xpose.msra.mxu0 %v720
    %730 = vmatprep.subr.mxu0 0.0
    %731 = vmatpush1.xpose.msra.mxu0 %v722
    %732 = vmatprep.subr.mxu0 0.0
    %733 = vmatpush1.xpose.msra.mxu0 0.0
    %734 = vmatprep.subr.mxu0 0.0
    %735 = vmatpush1.xpose.msra.mxu0 0.0
    %736 = vmatprep.subr.mxu0 0.0
    %737 = vmatpush1.xpose.msra.mxu0 0.0
    %738 = vmatprep.subr.mxu0 0.0
    %739 = vmatpush1.xpose.msra.mxu0 0.0
    %740 = vmatprep.subr.mxu0 0.0
    %741 = vmatpush1.xpose.msra.mxu0 0.0
    %742 = vmatprep.subr.mxu0 0.0
    %743 = vmatpush1.xpose.msra.mxu0 0.0
    %744 = vmatprep.subr.mxu0 0.0
    %745 = vmatpush1.xpose.msra.mxu0 0.0
    %746 = vmatprep.subr.mxu0 0.0
    %747 = vmatpush1.xpose.msra.mxu0 0.0
    %748 = vmatprep.subr.mxu0 0.0
    %749 = vmatpush1.xpose.msra.mxu0 0.0
    %750 = vmatprep.subr.mxu0 0.0
    %751 = vmatpush1.xpose.msra.mxu0 0.0
    %752 = vmatprep.subr.mxu0 0.0
    %753 = vmatpush1.xpose.msra.mxu0 0.0
    %754 = vmatprep.subr.mxu0 0.0
    %755 = vmatpush1.xpose.msra.mxu0 0.0
    %756 = vmatprep.subr.mxu0 0.0
    %757 = vmatpush1.xpose.msra.mxu0 0.0
    %758 = vmatprep.subr.mxu0 0.0
    %759 = vmatpush1.xpose.msra.mxu0 0.0
    %760 = vmatprep.subr.mxu0 0.0
    %761 = vmatpush1.xpose.msra.mxu0 0.0
    %762 = vmatprep.subr.mxu0 0.0
    %763 = vmatpush1.xpose.msra.mxu0 0.0
    %764 = vmatprep.subr.mxu0 0.0
    %765 = vmatpush1.xpose.msra.mxu0 0.0
    %766 = vmatprep.subr.mxu0 0.0
    %767 = vmatpush1.xpose.msra.mxu0 0.0
    %768 = vmatprep.subr.mxu0 0.0
    %769 = vmatpush1.xpose.msra.mxu0 0.0
    %770 = vmatprep.subr.mxu0 0.0
    %771 = vmatpush1.xpose.msra.mxu0 0.0
    %772 = vmatprep.subr.mxu0 0.0
    %773 = vmatpush1.xpose.msra.mxu0 0.0
    %774 = vmatprep.subr.mxu0 0.0
    %775 = vmatpush1.xpose.msra.mxu0 0.0
    %776 = vmatprep.subr.mxu0 0.0
    %777 = vmatpush1.xpose.msra.mxu0 0.0
    %778 = vmatprep.subr.mxu0 0.0
    %779 = vmatpush1.xpose.msra.mxu0 0.0
    %780 = vmatprep.subr.mxu0 0.0
    %781 = vmatpush1.xpose.msra.mxu0 0.0
    %782 = vmatprep.subr.mxu0 0.0
    %783 = vmatpush1.xpose.msra.mxu0 0.0
    %784 = vmatprep.subr.mxu0 0.0
    %785 = vmatpush1.xpose.msra.mxu0 0.0
    %786 = vmatprep.subr.mxu0 0.0
    %787 = vmatpush1.xpose.msra.mxu0 0.0
    %788 = vmatprep.mubr.f32.mxu0 0.0
    %789 = vmatmul.mubr.f32.gmra.mrb[0].mxu0 %v708
    %v790 = vpop.f32.mrb[0].mxu0
    %v791 = vadd.f32 0.0, %v790
    %v792 = vpop.f32.mrb[0].mxu0
    %793 = vmatprep.mubr.f32.mxu0 0.0
    %794 = vmatmul.mubr.f32.gmra.mrb[0].mxu0 %v710
    %v795 = vpop.f32.mrb[0].mxu0
    %v796 = vadd.f32 0.0, %v795
    %v797 = vpop.f32.mrb[0].mxu0
    %798 = vmatprep.mubr.f32.mxu0 0.0
    %799 = vmatmul.mubr.f32.gmra.mrb[0].mxu0 %v712
    %v800 = vpop.f32.mrb[0].mxu0
    %v801 = vadd.f32 0.0, %v800
    %v802 = vpop.f32.mrb[0].mxu0
    %803 = vmatprep.mubr.f32.mxu0 0.0
    %804 = vmatmul.mubr.f32.gmra.mrb[0].mxu0 %v714
    %v805 = vpop.f32.mrb[0].mxu0
    %v806 = vadd.f32 0.0, %v805
    %v807 = vpop.f32.mrb[0].mxu0
    %808 = vdwg.mxu0
    %v809 = vsel %vm417, %v791, -1e+30
    %v810 = vsel %vm418, %v796, -1e+30
    %v811 = vsel %vm419, %v801, -1e+30
    %v812 = vsel %vm420, %v806, -1e+30
    %v813 = vsel %vm437, %v809, -inf
    %814 = vmax.xlane.f32.xlu0 %v813
    %v815 = vpop.xlane.xlu0 %814
    %v816 = vsel %vm437, %v810, -inf
    %817 = vmax.xlane.f32.xlu0 %v816
    %v818 = vpop.xlane.xlu0 %817
    %v819 = vsel %vm437, %v811, -inf
    %820 = vmax.xlane.f32.xlu0 %v819
    %v821 = vpop.xlane.xlu0 %820
    %v822 = vsel %vm437, %v812, -inf
    %823 = vmax.xlane.f32.xlu0 %v822
    %v824 = vpop.xlane.xlu0 %823
    %v825 = vsub.f32 %v809, %v815
    %v826 = vsub.f32 %v810, %v818
    %v827 = vsub.f32 %v811, %v821
    %v828 = vsub.f32 %v812, %v824
    %v829 = vmul.f32 %v825, 1.442695
    %v830 = vpow.pop %v829
    %v831 = vmul.f32 %v826, 1.442695
    %v832 = vpow.pop %v831
    %v833 = vmul.f32 %v827, 1.442695
    %v834 = vpow.pop %v833
    %v835 = vmul.f32 %v828, 1.442695
    %v836 = vpow.pop %v835
    %v837 = vsel %vm437, %v830, 0.0
    %838 = vadd.xlane.f32.xlu0 %v837
    %v839 = vpop.xlane.xlu0 %838
    %v840 = vsel %vm437, %v832, 0.0
    %841 = vadd.xlane.f32.xlu0 %v840
    %v842 = vpop.xlane.xlu0 %841
    %v843 = vsel %vm437, %v834, 0.0
    %844 = vadd.xlane.f32.xlu0 %v843
    %v845 = vpop.xlane.xlu0 %844
    %v846 = vsel %vm437, %v836, 0.0
    %847 = vadd.xlane.f32.xlu0 %v846
    %v848 = vpop.xlane.xlu0 %847
    %v849 = vrcp.pop %v839
    %v850 = vrcp.pop %v842
    %v851 = vrcp.pop %v845
    %v852 = vrcp.pop %v848
    %v853 = vmul.f32 %v830, %v849
    %v854 = vmul.f32 %v832, %v850
    %v855 = vmul.f32 %v834, %v851
    %v856 = vmul.f32 %v836, %v852
    %861 = vrot.lane.b32.xlu0 %v332, 96
    %v862 = vpop.permute.xlu0 %861
    %863 = vrot.lane.b32.xlu0 %v337, 96
    %v864 = vpop.permute.xlu0 %863
    %865 = vrot.lane.b32.xlu0 %v342, 96
    %v866 = vpop.permute.xlu0 %865
    %867 = vrot.lane.b32.xlu0 %v347, 96
    %v868 = vpop.permute.xlu0 %867
    %v874 = vsel %vm437, %v853, 0
    %v877 = vsel %vm437, %v854, 0
    %v880 = vsel %vm437, %v855, 0
    %v883 = vsel %vm437, %v856, 0
    %885 = vmatprep.subr.mxu0 0.0
    %886 = vmatpush1.msra.mxu0 %v862
    %887 = vmatprep.subr.mxu0 0.0
    %888 = vmatpush1.msra.mxu0 %v864
    %889 = vmatprep.subr.mxu0 0.0
    %890 = vmatpush1.msra.mxu0 %v866
    %891 = vmatprep.subr.mxu0 0.0
    %892 = vmatpush1.msra.mxu0 %v868
    %893 = vmatprep.subr.mxu0 0.0
    %894 = vmatpush1.msra.mxu0 0.0
    %895 = vmatprep.subr.mxu0 0.0
    %896 = vmatpush1.msra.mxu0 0.0
    %897 = vmatprep.subr.mxu0 0.0
    %898 = vmatpush1.msra.mxu0 0.0
    %899 = vmatprep.subr.mxu0 0.0
    %900 = vmatpush1.msra.mxu0 0.0
    %901 = vmatprep.subr.mxu0 0.0
    %902 = vmatpush1.msra.mxu0 0.0
    %903 = vmatprep.subr.mxu0 0.0
    %904 = vmatpush1.msra.mxu0 0.0
    %905 = vmatprep.subr.mxu0 0.0
    %906 = vmatpush1.msra.mxu0 0.0
    %907 = vmatprep.subr.mxu0 0.0
    %908 = vmatpush1.msra.mxu0 0.0
    %909 = vmatprep.subr.mxu0 0.0
    %910 = vmatpush1.msra.mxu0 0.0
    %911 = vmatprep.subr.mxu0 0.0
    %912 = vmatpush1.msra.mxu0 0.0
    %913 = vmatprep.subr.mxu0 0.0
    %914 = vmatpush1.msra.mxu0 0.0
    %915 = vmatprep.subr.mxu0 0.0
    %916 = vmatpush1.msra.mxu0 0.0
    %917 = vmatprep.subr.mxu0 0.0
    %918 = vmatpush1.msra.mxu0 0.0
    %919 = vmatprep.subr.mxu0 0.0
    %920 = vmatpush1.msra.mxu0 0.0
    %921 = vmatprep.subr.mxu0 0.0
    %922 = vmatpush1.msra.mxu0 0.0
    %923 = vmatprep.subr.mxu0 0.0
    %924 = vmatpush1.msra.mxu0 0.0
    %925 = vmatprep.subr.mxu0 0.0
    %926 = vmatpush1.msra.mxu0 0.0
    %927 = vmatprep.subr.mxu0 0.0
    %928 = vmatpush1.msra.mxu0 0.0
    %929 = vmatprep.subr.mxu0 0.0
    %930 = vmatpush1.msra.mxu0 0.0
    %931 = vmatprep.subr.mxu0 0.0
    %932 = vmatpush1.msra.mxu0 0.0
    %933 = vmatprep.subr.mxu0 0.0
    %934 = vmatpush1.msra.mxu0 0.0
    %935 = vmatprep.subr.mxu0 0.0
    %936 = vmatpush1.msra.mxu0 0.0
    %937 = vmatprep.subr.mxu0 0.0
    %938 = vmatpush1.msra.mxu0 0.0
    %939 = vmatprep.subr.mxu0 0.0
    %940 = vmatpush1.msra.mxu0 0.0
    %941 = vmatprep.subr.mxu0 0.0
    %942 = vmatpush1.msra.mxu0 0.0
    %943 = vmatprep.subr.mxu0 0.0
    %944 = vmatpush1.msra.mxu0 0.0
    %945 = vmatprep.subr.mxu0 0.0
    %946 = vmatpush1.msra.mxu0 0.0
    %947 = vmatprep.subr.mxu0 0.0
    %948 = vmatpush1.msra.mxu0 0.0
    %949 = vmatprep.mubr.f32.mxu0 0.0
    %950 = vmatmul.mubr.f32.gmra.mrb[0].mxu0 %v874
    %v951 = vpop.f32.mrb[0].mxu0
    %v952 = vadd.f32 0.0, %v951
    %v953 = vpop.f32.mrb[0].mxu0
    %954 = vmatprep.mubr.f32.mxu0 0.0
    %955 = vmatmul.mubr.f32.gmra.mrb[0].mxu0 %v877
    %v956 = vpop.f32.mrb[0].mxu0
    %v957 = vadd.f32 0.0, %v956
    %v958 = vpop.f32.mrb[0].mxu0
    %959 = vmatprep.mubr.f32.mxu0 0.0
    %960 = vmatmul.mubr.f32.gmra.mrb[0].mxu0 %v880
    %v961 = vpop.f32.mrb[0].mxu0
    %v962 = vadd.f32 0.0, %v961
    %v963 = vpop.f32.mrb[0].mxu0
    %964 = vmatprep.mubr.f32.mxu0 0.0
    %965 = vmatmul.mubr.f32.gmra.mrb[0].mxu0 %v883
    %v966 = vpop.f32.mrb[0].mxu0
    %v967 = vadd.f32 0.0, %v966
    %v968 = vpop.f32.mrb[0].mxu0
    %969 = vdwg.mxu0
    %v971 = vsel %vm437, %v952, 0
    %v974 = vsel %vm437, %v957, 0
    %v977 = vsel %vm437, %v962, 0
    %v980 = vsel %vm437, %v967, 0
    %982 = vmatprep.subr.mxu0 0.0
    %983 = vmatpush1.msra.mxu0 %v425
    %984 = vmatprep.subr.mxu0 0.0
    %985 = vmatpush1.msra.mxu0 %v426
    %986 = vmatprep.subr.mxu0 0.0
    %987 = vmatpush1.msra.mxu0 %v427
    %988 = vmatprep.subr.mxu0 0.0
    %989 = vmatpush1.msra.mxu0 %v428
    %990 = vmatprep.subr.mxu0 0.0
    %991 = vmatpush1.msra.mxu0 0.0
    %992 = vmatprep.subr.mxu0 0.0
    %993 = vmatpush1.msra.mxu0 0.0
    %994 = vmatprep.subr.mxu0 0.0
    %995 = vmatpush1.msra.mxu0 0.0
    %996 = vmatprep.subr.mxu0 0.0
    %997 = vmatpush1.msra.mxu0 0.0
    %998 = vmatprep.subr.mxu0 0.0
    %999 = vmatpush1.msra.mxu0 0.0
    %1000 = vmatprep.subr.mxu0 0.0
    %1001 = vmatpush1.msra.mxu0 0.0
    %1002 = vmatprep.subr.mxu0 0.0
    %1003 = vmatpush1.msra.mxu0 0.0
    %1004 = vmatprep.subr.mxu0 0.0
    %1005 = vmatpush1.msra.mxu0 0.0
    %1006 = vmatprep.subr.mxu0 0.0
    %1007 = vmatpush1.msra.mxu0 0.0
    %1008 = vmatprep.subr.mxu0 0.0
    %1009 = vmatpush1.msra.mxu0 0.0
    %1010 = vmatprep.subr.mxu0 0.0
    %1011 = vmatpush1.msra.mxu0 0.0
    %1012 = vmatprep.subr.mxu0 0.0
    %1013 = vmatpush1.msra.mxu0 0.0
    %1014 = vmatprep.subr.mxu0 0.0
    %1015 = vmatpush1.msra.mxu0 0.0
    %1016 = vmatprep.subr.mxu0 0.0
    %1017 = vmatpush1.msra.mxu0 0.0
    %1018 = vmatprep.subr.mxu0 0.0
    %1019 = vmatpush1.msra.mxu0 0.0
    %1020 = vmatprep.subr.mxu0 0.0
    %1021 = vmatpush1.msra.mxu0 0.0
    %1022 = vmatprep.subr.mxu0 0.0
    %1023 = vmatpush1.msra.mxu0 0.0
    %1024 = vmatprep.subr.mxu0 0.0
    %1025 = vmatpush1.msra.mxu0 0.0
    %1026 = vmatprep.subr.mxu0 0.0
    %1027 = vmatpush1.msra.mxu0 0.0
    %1028 = vmatprep.subr.mxu0 0.0
    %1029 = vmatpush1.msra.mxu0 0.0
    %1030 = vmatprep.subr.mxu0 0.0
    %1031 = vmatpush1.msra.mxu0 0.0
    %1032 = vmatprep.subr.mxu0 0.0
    %1033 = vmatpush1.msra.mxu0 0.0
    %1034 = vmatprep.subr.mxu0 0.0
    %1035 = vmatpush1.msra.mxu0 0.0
    %1036 = vmatprep.subr.mxu0 0.0
    %1037 = vmatpush1.msra.mxu0 0.0
    %1038 = vmatprep.subr.mxu0 0.0
    %1039 = vmatpush1.msra.mxu0 0.0
    %1040 = vmatprep.subr.mxu0 0.0
    %1041 = vmatpush1.msra.mxu0 0.0
    %1042 = vmatprep.subr.mxu0 0.0
    %1043 = vmatpush1.msra.mxu0 0.0
    %1044 = vmatprep.subr.mxu0 0.0
    %1045 = vmatpush1.msra.mxu0 0.0
    %1046 = vmatprep.mubr.f32.mxu0 0.0
    %1047 = vmatmul.mubr.f32.gmra.mrb[0].mxu0 %v971
    %v1048 = vpop.f32.mrb[0].mxu0
    %v1049 = vadd.f32 0.0, %v1048
    %v1050 = vpop.f32.mrb[0].mxu0
    %1051 = vmatprep.mubr.f32.mxu0 0.0
    %1052 = vmatmul.mubr.f32.gmra.mrb[0].mxu0 %v974
    %v1053 = vpop.f32.mrb[0].mxu0
    %v1054 = vadd.f32 0.0, %v1053
    %v1055 = vpop.f32.mrb[0].mxu0
    %1056 = vmatprep.mubr.f32.mxu0 0.0
    %1057 = vmatmul.mubr.f32.gmra.mrb[0].mxu0 %v977
    %v1058 = vpop.f32.mrb[0].mxu0
    %v1059 = vadd.f32 0.0, %v1058
    %v1060 = vpop.f32.mrb[0].mxu0
    %1061 = vmatprep.mubr.f32.mxu0 0.0
    %1062 = vmatmul.mubr.f32.gmra.mrb[0].mxu0 %v980
    %v1063 = vpop.f32.mrb[0].mxu0
    %v1064 = vadd.f32 0.0, %v1063
    %v1065 = vpop.f32.mrb[0].mxu0
    %1066 = vdwg.mxu0
    %v1068 = vsel %vm437, %v674, 0
    %v1071 = vsel %vm437, %v679, 0
    %v1074 = vsel %vm437, %v684, 0
    %v1077 = vsel %vm437, %v689, 0
    %1079 = vmatprep.subr.mxu0 0.0
    %1080 = vmatpush1.msra.mxu0 %v421
    %1081 = vmatprep.subr.mxu0 0.0
    %1082 = vmatpush1.msra.mxu0 %v422
    %1083 = vmatprep.subr.mxu0 0.0
    %1084 = vmatpush1.msra.mxu0 %v423
    %1085 = vmatprep.subr.mxu0 0.0
    %1086 = vmatpush1.msra.mxu0 %v424
    %1087 = vmatprep.subr.mxu0 0.0
    %1088 = vmatpush1.msra.mxu0 0.0
    %1089 = vmatprep.subr.mxu0 0.0
    %1090 = vmatpush1.msra.mxu0 0.0
    %1091 = vmatprep.subr.mxu0 0.0
    %1092 = vmatpush1.msra.mxu0 0.0
    %1093 = vmatprep.subr.mxu0 0.0
    %1094 = vmatpush1.msra.mxu0 0.0
    %1095 = vmatprep.subr.mxu0 0.0
    %1096 = vmatpush1.msra.mxu0 0.0
    %1097 = vmatprep.subr.mxu0 0.0
    %1098 = vmatpush1.msra.mxu0 0.0
    %1099 = vmatprep.subr.mxu0 0.0
    %1100 = vmatpush1.msra.mxu0 0.0
    %1101 = vmatprep.subr.mxu0 0.0
    %1102 = vmatpush1.msra.mxu0 0.0
    %1103 = vmatprep.subr.mxu0 0.0
    %1104 = vmatpush1.msra.mxu0 0.0
    %1105 = vmatprep.subr.mxu0 0.0
    %1106 = vmatpush1.msra.mxu0 0.0
    %1107 = vmatprep.subr.mxu0 0.0
    %1108 = vmatpush1.msra.mxu0 0.0
    %1109 = vmatprep.subr.mxu0 0.0
    %1110 = vmatpush1.msra.mxu0 0.0
    %1111 = vmatprep.subr.mxu0 0.0
    %1112 = vmatpush1.msra.mxu0 0.0
    %1113 = vmatprep.subr.mxu0 0.0
    %1114 = vmatpush1.msra.mxu0 0.0
    %1115 = vmatprep.subr.mxu0 0.0
    %1116 = vmatpush1.msra.mxu0 0.0
    %1117 = vmatprep.subr.mxu0 0.0
    %1118 = vmatpush1.msra.mxu0 0.0
    %1119 = vmatprep.subr.mxu0 0.0
    %1120 = vmatpush1.msra.mxu0 0.0
    %1121 = vmatprep.subr.mxu0 0.0
    %1122 = vmatpush1.msra.mxu0 0.0
    %1123 = vmatprep.subr.mxu0 0.0
    %1124 = vmatpush1.msra.mxu0 0.0
    %1125 = vmatprep.subr.mxu0 0.0
    %1126 = vmatpush1.msra.mxu0 0.0
    %1127 = vmatprep.subr.mxu0 0.0
    %1128 = vmatpush1.msra.mxu0 0.0
    %1129 = vmatprep.subr.mxu0 0.0
    %1130 = vmatpush1.msra.mxu0 0.0
    %1131 = vmatprep.subr.mxu0 0.0
    %1132 = vmatpush1.msra.mxu0 0.0
    %1133 = vmatprep.subr.mxu0 0.0
    %1134 = vmatpush1.msra.mxu0 0.0
    %1135 = vmatprep.subr.mxu0 0.0
    %1136 = vmatpush1.msra.mxu0 0.0
    %1137 = vmatprep.subr.mxu0 0.0
    %1138 = vmatpush1.msra.mxu0 0.0
    %1139 = vmatprep.subr.mxu0 0.0
    %1140 = vmatpush1.msra.mxu0 0.0
    %1141 = vmatprep.subr.mxu0 0.0
    %1142 = vmatpush1.msra.mxu0 0.0
    %1143 = vmatprep.mubr.f32.mxu0 0.0
    %1144 = vmatmul.mubr.f32.gmra.mrb[0].mxu0 %v1068
    %v1145 = vpop.f32.mrb[0].mxu0
    %v1146 = vadd.f32 %v1049, %v1145
    %v1147 = vpop.f32.mrb[0].mxu0
    %1148 = vmatprep.mubr.f32.mxu0 0.0
    %1149 = vmatmul.mubr.f32.gmra.mrb[0].mxu0 %v1071
    %v1150 = vpop.f32.mrb[0].mxu0
    %v1151 = vadd.f32 %v1054, %v1150
    %v1152 = vpop.f32.mrb[0].mxu0
    %1153 = vmatprep.mubr.f32.mxu0 0.0
    %1154 = vmatmul.mubr.f32.gmra.mrb[0].mxu0 %v1074
    %v1155 = vpop.f32.mrb[0].mxu0
    %v1156 = vadd.f32 %v1059, %v1155
    %v1157 = vpop.f32.mrb[0].mxu0
    %1158 = vmatprep.mubr.f32.mxu0 0.0
    %1159 = vmatmul.mubr.f32.gmra.mrb[0].mxu0 %v1077
    %v1160 = vpop.f32.mrb[0].mxu0
    %v1161 = vadd.f32 %v1064, %v1160
    %v1162 = vpop.f32.mrb[0].mxu0
    %1163 = vdwg.mxu0
    %1164 = vrot.lane.b32.xlu0 %v243, 64
    %v1165 = vpop.permute.xlu0 %1164
    %1166 = vrot.lane.b32.xlu0 %v249, 64
    %v1167 = vpop.permute.xlu0 %1166
    %1168 = vrot.lane.b32.xlu0 %v255, 64
    %v1169 = vpop.permute.xlu0 %1168
    %1170 = vrot.lane.b32.xlu0 %v261, 64
    %v1171 = vpop.permute.xlu0 %1170
    %1172 = vrot.lane.b32.xlu0 %v245, 64
    %v1173 = vpop.permute.xlu0 %1172
    %1174 = vrot.lane.b32.xlu0 %v251, 64
    %v1175 = vpop.permute.xlu0 %1174
    %1176 = vrot.lane.b32.xlu0 %v257, 64
    %v1177 = vpop.permute.xlu0 %1176
    %1178 = vrot.lane.b32.xlu0 %v263, 64
    %v1179 = vpop.permute.xlu0 %1178
    %v1180 = vsel %vm437, %v1165, 0
    %v1182 = vsel %vm437, %v1167, 0
    %v1184 = vsel %vm437, %v1169, 0
    %v1186 = vsel %vm437, %v1171, 0
    %v1188 = vsel %vm437, %v1173, 0
    %v1190 = vsel %vm437, %v1175, 0
    %v1192 = vsel %vm437, %v1177, 0
    %v1194 = vsel %vm437, %v1179, 0
    %1196 = vmatprep.subr.mxu0 0.0
    %1197 = vmatpush1.xpose.msra.mxu0 %v1188
    %1198 = vmatprep.subr.mxu0 0.0
    %1199 = vmatpush1.xpose.msra.mxu0 %v1190
    %1200 = vmatprep.subr.mxu0 0.0
    %1201 = vmatpush1.xpose.msra.mxu0 %v1192
    %1202 = vmatprep.subr.mxu0 0.0
    %1203 = vmatpush1.xpose.msra.mxu0 %v1194
    %1204 = vmatprep.subr.mxu0 0.0
    %1205 = vmatpush1.xpose.msra.mxu0 0.0
    %1206 = vmatprep.subr.mxu0 0.0
    %1207 = vmatpush1.xpose.msra.mxu0 0.0
    %1208 = vmatprep.subr.mxu0 0.0
    %1209 = vmatpush1.xpose.msra.mxu0 0.0
    %1210 = vmatprep.subr.mxu0 0.0
    %1211 = vmatpush1.xpose.msra.mxu0 0.0
    %1212 = vmatprep.subr.mxu0 0.0
    %1213 = vmatpush1.xpose.msra.mxu0 0.0
    %1214 = vmatprep.subr.mxu0 0.0
    %1215 = vmatpush1.xpose.msra.mxu0 0.0
    %1216 = vmatprep.subr.mxu0 0.0
    %1217 = vmatpush1.xpose.msra.mxu0 0.0
    %1218 = vmatprep.subr.mxu0 0.0
    %1219 = vmatpush1.xpose.msra.mxu0 0.0
    %1220 = vmatprep.subr.mxu0 0.0
    %1221 = vmatpush1.xpose.msra.mxu0 0.0
    %1222 = vmatprep.subr.mxu0 0.0
    %1223 = vmatpush1.xpose.msra.mxu0 0.0
    %1224 = vmatprep.subr.mxu0 0.0
    %1225 = vmatpush1.xpose.msra.mxu0 0.0
    %1226 = vmatprep.subr.mxu0 0.0
    %1227 = vmatpush1.xpose.msra.mxu0 0.0
    %1228 = vmatprep.subr.mxu0 0.0
    %1229 = vmatpush1.xpose.msra.mxu0 0.0
    %1230 = vmatprep.subr.mxu0 0.0
    %1231 = vmatpush1.xpose.msra.mxu0 0.0
    %1232 = vmatprep.subr.mxu0 0.0
    %1233 = vmatpush1.xpose.msra.mxu0 0.0
    %1234 = vmatprep.subr.mxu0 0.0
    %1235 = vmatpush1.xpose.msra.mxu0 0.0
    %1236 = vmatprep.subr.mxu0 0.0
    %1237 = vmatpush1.xpose.msra.mxu0 0.0
    %1238 = vmatprep.subr.mxu0 0.0
    %1239 = vmatpush1.xpose.msra.mxu0 0.0
    %1240 = vmatprep.subr.mxu0 0.0
    %1241 = vmatpush1.xpose.msra.mxu0 0.0
    %1242 = vmatprep.subr.mxu0 0.0
    %1243 = vmatpush1.xpose.msra.mxu0 0.0
    %1244 = vmatprep.subr.mxu0 0.0
    %1245 = vmatpush1.xpose.msra.mxu0 0.0
    %1246 = vmatprep.subr.mxu0 0.0
    %1247 = vmatpush1.xpose.msra.mxu0 0.0
    %1248 = vmatprep.subr.mxu0 0.0
    %1249 = vmatpush1.xpose.msra.mxu0 0.0
    %1250 = vmatprep.subr.mxu0 0.0
    %1251 = vmatpush1.xpose.msra.mxu0 0.0
    %1252 = vmatprep.subr.mxu0 0.0
    %1253 = vmatpush1.xpose.msra.mxu0 0.0
    %1254 = vmatprep.subr.mxu0 0.0
    %1255 = vmatpush1.xpose.msra.mxu0 0.0
    %1256 = vmatprep.subr.mxu0 0.0
    %1257 = vmatpush1.xpose.msra.mxu0 0.0
    %1258 = vmatprep.subr.mxu0 0.0
    %1259 = vmatpush1.xpose.msra.mxu0 0.0
    %1260 = vmatprep.mubr.f32.mxu0 0.0
    %1261 = vmatmul.mubr.f32.gmra.mrb[0].mxu0 %v1180
    %v1262 = vpop.f32.mrb[0].mxu0
    %v1263 = vadd.f32 0.0, %v1262
    %v1264 = vpop.f32.mrb[0].mxu0
    %1265 = vmatprep.mubr.f32.mxu0 0.0
    %1266 = vmatmul.mubr.f32.gmra.mrb[0].mxu0 %v1182
    %v1267 = vpop.f32.mrb[0].mxu0
    %v1268 = vadd.f32 0.0, %v1267
    %v1269 = vpop.f32.mrb[0].mxu0
    %1270 = vmatprep.mubr.f32.mxu0 0.0
    %1271 = vmatmul.mubr.f32.gmra.mrb[0].mxu0 %v1184
    %v1272 = vpop.f32.mrb[0].mxu0
    %v1273 = vadd.f32 0.0, %v1272
    %v1274 = vpop.f32.mrb[0].mxu0
    %1275 = vmatprep.mubr.f32.mxu0 0.0
    %1276 = vmatmul.mubr.f32.gmra.mrb[0].mxu0 %v1186
    %v1277 = vpop.f32.mrb[0].mxu0
    %v1278 = vadd.f32 0.0, %v1277
    %v1279 = vpop.f32.mrb[0].mxu0
    %1280 = vdwg.mxu0
    %v1281 = vsel %vm417, %v1263, -1e+30
    %v1282 = vsel %vm418, %v1268, -1e+30
    %v1283 = vsel %vm419, %v1273, -1e+30
    %v1284 = vsel %vm420, %v1278, -1e+30
    %v1285 = vsel %vm437, %v1281, -inf
    %1286 = vmax.xlane.f32.xlu0 %v1285
    %v1287 = vpop.xlane.xlu0 %1286
    %v1288 = vsel %vm437, %v1282, -inf
    %1289 = vmax.xlane.f32.xlu0 %v1288
    %v1290 = vpop.xlane.xlu0 %1289
    %v1291 = vsel %vm437, %v1283, -inf
    %1292 = vmax.xlane.f32.xlu0 %v1291
    %v1293 = vpop.xlane.xlu0 %1292
    %v1294 = vsel %vm437, %v1284, -inf
    %1295 = vmax.xlane.f32.xlu0 %v1294
    %v1296 = vpop.xlane.xlu0 %1295
    %v1297 = vsub.f32 %v1281, %v1287
    %v1298 = vsub.f32 %v1282, %v1290
    %v1299 = vsub.f32 %v1283, %v1293
    %v1300 = vsub.f32 %v1284, %v1296
    %v1301 = vmul.f32 %v1297, 1.442695
    %v1302 = vpow.pop %v1301
    %v1303 = vmul.f32 %v1298, 1.442695
    %v1304 = vpow.pop %v1303
    %v1305 = vmul.f32 %v1299, 1.442695
    %v1306 = vpow.pop %v1305
    %v1307 = vmul.f32 %v1300, 1.442695
    %v1308 = vpow.pop %v1307
    %v1309 = vsel %vm437, %v1302, 0.0
    %1310 = vadd.xlane.f32.xlu0 %v1309
    %v1311 = vpop.xlane.xlu0 %1310
    %v1312 = vsel %vm437, %v1304, 0.0
    %1313 = vadd.xlane.f32.xlu0 %v1312
    %v1314 = vpop.xlane.xlu0 %1313
    %v1315 = vsel %vm437, %v1306, 0.0
    %1316 = vadd.xlane.f32.xlu0 %v1315
    %v1317 = vpop.xlane.xlu0 %1316
    %v1318 = vsel %vm437, %v1308, 0.0
    %1319 = vadd.xlane.f32.xlu0 %v1318
    %v1320 = vpop.xlane.xlu0 %1319
    %v1321 = vrcp.pop %v1311
    %v1322 = vrcp.pop %v1314
    %v1323 = vrcp.pop %v1317
    %v1324 = vrcp.pop %v1320
    %v1325 = vmul.f32 %v1302, %v1321
    %v1326 = vmul.f32 %v1304, %v1322
    %v1327 = vmul.f32 %v1306, %v1323
    %v1328 = vmul.f32 %v1308, %v1324
    %1329 = vrot.lane.b32.xlu0 %v332, 64
    %v1330 = vpop.permute.xlu0 %1329
    %1331 = vrot.lane.b32.xlu0 %v337, 64
    %v1332 = vpop.permute.xlu0 %1331
    %1333 = vrot.lane.b32.xlu0 %v342, 64
    %v1334 = vpop.permute.xlu0 %1333
    %1335 = vrot.lane.b32.xlu0 %v347, 64
    %v1336 = vpop.permute.xlu0 %1335
    %v1342 = vsel %vm437, %v1325, 0
    %v1345 = vsel %vm437, %v1326, 0
    %v1348 = vsel %vm437, %v1327, 0
    %v1351 = vsel %vm437, %v1328, 0
    %1353 = vmatprep.subr.mxu0 0.0
    %1354 = vmatpush1.msra.mxu0 %v1330
    %1355 = vmatprep.subr.mxu0 0.0
    %1356 = vmatpush1.msra.mxu0 %v1332
    %1357 = vmatprep.subr.mxu0 0.0
    %1358 = vmatpush1.msra.mxu0 %v1334
    %1359 = vmatprep.subr.mxu0 0.0
    %1360 = vmatpush1.msra.mxu0 %v1336
    %1361 = vmatprep.subr.mxu0 0.0
    %1362 = vmatpush1.msra.mxu0 0.0
    %1363 = vmatprep.subr.mxu0 0.0
    %1364 = vmatpush1.msra.mxu0 0.0
    %1365 = vmatprep.subr.mxu0 0.0
    %1366 = vmatpush1.msra.mxu0 0.0
    %1367 = vmatprep.subr.mxu0 0.0
    %1368 = vmatpush1.msra.mxu0 0.0
    %1369 = vmatprep.subr.mxu0 0.0
    %1370 = vmatpush1.msra.mxu0 0.0
    %1371 = vmatprep.subr.mxu0 0.0
    %1372 = vmatpush1.msra.mxu0 0.0
    %1373 = vmatprep.subr.mxu0 0.0
    %1374 = vmatpush1.msra.mxu0 0.0
    %1375 = vmatprep.subr.mxu0 0.0
    %1376 = vmatpush1.msra.mxu0 0.0
    %1377 = vmatprep.subr.mxu0 0.0
    %1378 = vmatpush1.msra.mxu0 0.0
    %1379 = vmatprep.subr.mxu0 0.0
    %1380 = vmatpush1.msra.mxu0 0.0
    %1381 = vmatprep.subr.mxu0 0.0
    %1382 = vmatpush1.msra.mxu0 0.0
    %1383 = vmatprep.subr.mxu0 0.0
    %1384 = vmatpush1.msra.mxu0 0.0
    %1385 = vmatprep.subr.mxu0 0.0
    %1386 = vmatpush1.msra.mxu0 0.0
    %1387 = vmatprep.subr.mxu0 0.0
    %1388 = vmatpush1.msra.mxu0 0.0
    %1389 = vmatprep.subr.mxu0 0.0
    %1390 = vmatpush1.msra.mxu0 0.0
    %1391 = vmatprep.subr.mxu0 0.0
    %1392 = vmatpush1.msra.mxu0 0.0
    %1393 = vmatprep.subr.mxu0 0.0
    %1394 = vmatpush1.msra.mxu0 0.0
    %1395 = vmatprep.subr.mxu0 0.0
    %1396 = vmatpush1.msra.mxu0 0.0
    %1397 = vmatprep.subr.mxu0 0.0
    %1398 = vmatpush1.msra.mxu0 0.0
    %1399 = vmatprep.subr.mxu0 0.0
    %1400 = vmatpush1.msra.mxu0 0.0
    %1401 = vmatprep.subr.mxu0 0.0
    %1402 = vmatpush1.msra.mxu0 0.0
    %1403 = vmatprep.subr.mxu0 0.0
    %1404 = vmatpush1.msra.mxu0 0.0
    %1405 = vmatprep.subr.mxu0 0.0
    %1406 = vmatpush1.msra.mxu0 0.0
    %1407 = vmatprep.subr.mxu0 0.0
    %1408 = vmatpush1.msra.mxu0 0.0
    %1409 = vmatprep.subr.mxu0 0.0
    %1410 = vmatpush1.msra.mxu0 0.0
    %1411 = vmatprep.subr.mxu0 0.0
    %1412 = vmatpush1.msra.mxu0 0.0
    %1413 = vmatprep.subr.mxu0 0.0
    %1414 = vmatpush1.msra.mxu0 0.0
    %1415 = vmatprep.subr.mxu0 0.0
    %1416 = vmatpush1.msra.mxu0 0.0
    %1417 = vmatprep.mubr.f32.mxu0 0.0
    %1418 = vmatmul.mubr.f32.gmra.mrb[0].mxu0 %v1342
    %v1419 = vpop.f32.mrb[0].mxu0
    %v1420 = vadd.f32 0.0, %v1419
    %v1421 = vpop.f32.mrb[0].mxu0
    %1422 = vmatprep.mubr.f32.mxu0 0.0
    %1423 = vmatmul.mubr.f32.gmra.mrb[0].mxu0 %v1345
    %v1424 = vpop.f32.mrb[0].mxu0
    %v1425 = vadd.f32 0.0, %v1424
    %v1426 = vpop.f32.mrb[0].mxu0
    %1427 = vmatprep.mubr.f32.mxu0 0.0
    %1428 = vmatmul.mubr.f32.gmra.mrb[0].mxu0 %v1348
    %v1429 = vpop.f32.mrb[0].mxu0
    %v1430 = vadd.f32 0.0, %v1429
    %v1431 = vpop.f32.mrb[0].mxu0
    %1432 = vmatprep.mubr.f32.mxu0 0.0
    %1433 = vmatmul.mubr.f32.gmra.mrb[0].mxu0 %v1351
    %v1434 = vpop.f32.mrb[0].mxu0
    %v1435 = vadd.f32 0.0, %v1434
    %v1436 = vpop.f32.mrb[0].mxu0
    %1437 = vdwg.mxu0
    %v1439 = vsel %vm437, %v1420, 0
    %v1442 = vsel %vm437, %v1425, 0
    %v1445 = vsel %vm437, %v1430, 0
    %v1448 = vsel %vm437, %v1435, 0
    %1450 = vmatprep.subr.mxu0 0.0
    %1451 = vmatpush1.msra.mxu0 %v429
    %1452 = vmatprep.subr.mxu0 0.0
    %1453 = vmatpush1.msra.mxu0 %v430
    %1454 = vmatprep.subr.mxu0 0.0
    %1455 = vmatpush1.msra.mxu0 %v431
    %1456 = vmatprep.subr.mxu0 0.0
    %1457 = vmatpush1.msra.mxu0 %v432
    %1458 = vmatprep.subr.mxu0 0.0
    %1459 = vmatpush1.msra.mxu0 0.0
    %1460 = vmatprep.subr.mxu0 0.0
    %1461 = vmatpush1.msra.mxu0 0.0
    %1462 = vmatprep.subr.mxu0 0.0
    %1463 = vmatpush1.msra.mxu0 0.0
    %1464 = vmatprep.subr.mxu0 0.0
    %1465 = vmatpush1.msra.mxu0 0.0
    %1466 = vmatprep.subr.mxu0 0.0
    %1467 = vmatpush1.msra.mxu0 0.0
    %1468 = vmatprep.subr.mxu0 0.0
    %1469 = vmatpush1.msra.mxu0 0.0
    %1470 = vmatprep.subr.mxu0 0.0
    %1471 = vmatpush1.msra.mxu0 0.0
    %1472 = vmatprep.subr.mxu0 0.0
    %1473 = vmatpush1.msra.mxu0 0.0
    %1474 = vmatprep.subr.mxu0 0.0
    %1475 = vmatpush1.msra.mxu0 0.0
    %1476 = vmatprep.subr.mxu0 0.0
    %1477 = vmatpush1.msra.mxu0 0.0
    %1478 = vmatprep.subr.mxu0 0.0
    %1479 = vmatpush1.msra.mxu0 0.0
    %1480 = vmatprep.subr.mxu0 0.0
    %1481 = vmatpush1.msra.mxu0 0.0
    %1482 = vmatprep.subr.mxu0 0.0
    %1483 = vmatpush1.msra.mxu0 0.0
    %1484 = vmatprep.subr.mxu0 0.0
    %1485 = vmatpush1.msra.mxu0 0.0
    %1486 = vmatprep.subr.mxu0 0.0
    %1487 = vmatpush1.msra.mxu0 0.0
    %1488 = vmatprep.subr.mxu0 0.0
    %1489 = vmatpush1.msra.mxu0 0.0
    %1490 = vmatprep.subr.mxu0 0.0
    %1491 = vmatpush1.msra.mxu0 0.0
    %1492 = vmatprep.subr.mxu0 0.0
    %1493 = vmatpush1.msra.mxu0 0.0
    %1494 = vmatprep.subr.mxu0 0.0
    %1495 = vmatpush1.msra.mxu0 0.0
    %1496 = vmatprep.subr.mxu0 0.0
    %1497 = vmatpush1.msra.mxu0 0.0
    %1498 = vmatprep.subr.mxu0 0.0
    %1499 = vmatpush1.msra.mxu0 0.0
    %1500 = vmatprep.subr.mxu0 0.0
    %1501 = vmatpush1.msra.mxu0 0.0
    %1502 = vmatprep.subr.mxu0 0.0
    %1503 = vmatpush1.msra.mxu0 0.0
    %1504 = vmatprep.subr.mxu0 0.0
    %1505 = vmatpush1.msra.mxu0 0.0
    %1506 = vmatprep.subr.mxu0 0.0
    %1507 = vmatpush1.msra.mxu0 0.0
    %1508 = vmatprep.subr.mxu0 0.0
    %1509 = vmatpush1.msra.mxu0 0.0
    %1510 = vmatprep.subr.mxu0 0.0
    %1511 = vmatpush1.msra.mxu0 0.0
    %1512 = vmatprep.subr.mxu0 0.0
    %1513 = vmatpush1.msra.mxu0 0.0
    %1514 = vmatprep.mubr.f32.mxu0 0.0
    %1515 = vmatmul.mubr.f32.gmra.mrb[0].mxu0 %v1439
    %v1516 = vpop.f32.mrb[0].mxu0
    %v1517 = vadd.f32 0.0, %v1516
    %v1518 = vpop.f32.mrb[0].mxu0
    %1519 = vmatprep.mubr.f32.mxu0 0.0
    %1520 = vmatmul.mubr.f32.gmra.mrb[0].mxu0 %v1442
    %v1521 = vpop.f32.mrb[0].mxu0
    %v1522 = vadd.f32 0.0, %v1521
    %v1523 = vpop.f32.mrb[0].mxu0
    %1524 = vmatprep.mubr.f32.mxu0 0.0
    %1525 = vmatmul.mubr.f32.gmra.mrb[0].mxu0 %v1445
    %v1526 = vpop.f32.mrb[0].mxu0
    %v1527 = vadd.f32 0.0, %v1526
    %v1528 = vpop.f32.mrb[0].mxu0
    %1529 = vmatprep.mubr.f32.mxu0 0.0
    %1530 = vmatmul.mubr.f32.gmra.mrb[0].mxu0 %v1448
    %v1531 = vpop.f32.mrb[0].mxu0
    %v1532 = vadd.f32 0.0, %v1531
    %v1533 = vpop.f32.mrb[0].mxu0
    %1534 = vdwg.mxu0
    %v1535 = vadd.f32 %v1146, %v1517
    %v1536 = vadd.f32 %v1151, %v1522
    %v1537 = vadd.f32 %v1156, %v1527
    %v1538 = vadd.f32 %v1161, %v1532
    %1539 = vrot.lane.b32.xlu0 %v243, 32
    %v1540 = vpop.permute.xlu0 %1539
    %1541 = vrot.lane.b32.xlu0 %v249, 32
    %v1542 = vpop.permute.xlu0 %1541
    %1543 = vrot.lane.b32.xlu0 %v255, 32
    %v1544 = vpop.permute.xlu0 %1543
    %1545 = vrot.lane.b32.xlu0 %v261, 32
    %v1546 = vpop.permute.xlu0 %1545
    %1547 = vrot.lane.b32.xlu0 %v245, 32
    %v1548 = vpop.permute.xlu0 %1547
    %1549 = vrot.lane.b32.xlu0 %v251, 32
    %v1550 = vpop.permute.xlu0 %1549
    %1551 = vrot.lane.b32.xlu0 %v257, 32
    %v1552 = vpop.permute.xlu0 %1551
    %1553 = vrot.lane.b32.xlu0 %v263, 32
    %v1554 = vpop.permute.xlu0 %1553
    %v1555 = vsel %vm437, %v1540, 0
    %v1557 = vsel %vm437, %v1542, 0
    %v1559 = vsel %vm437, %v1544, 0
    %v1561 = vsel %vm437, %v1546, 0
    %v1563 = vsel %vm437, %v1548, 0
    %v1565 = vsel %vm437, %v1550, 0
    %v1567 = vsel %vm437, %v1552, 0
    %v1569 = vsel %vm437, %v1554, 0
    %1571 = vmatprep.subr.mxu0 0.0
    %1572 = vmatpush1.xpose.msra.mxu0 %v1563
    %1573 = vmatprep.subr.mxu0 0.0
    %1574 = vmatpush1.xpose.msra.mxu0 %v1565
    %1575 = vmatprep.subr.mxu0 0.0
    %1576 = vmatpush1.xpose.msra.mxu0 %v1567
    %1577 = vmatprep.subr.mxu0 0.0
    %1578 = vmatpush1.xpose.msra.mxu0 %v1569
    %1579 = vmatprep.subr.mxu0 0.0
    %1580 = vmatpush1.xpose.msra.mxu0 0.0
    %1581 = vmatprep.subr.mxu0 0.0
    %1582 = vmatpush1.xpose.msra.mxu0 0.0
    %1583 = vmatprep.subr.mxu0 0.0
    %1584 = vmatpush1.xpose.msra.mxu0 0.0
    %1585 = vmatprep.subr.mxu0 0.0
    %1586 = vmatpush1.xpose.msra.mxu0 0.0
    %1587 = vmatprep.subr.mxu0 0.0
    %1588 = vmatpush1.xpose.msra.mxu0 0.0
    %1589 = vmatprep.subr.mxu0 0.0
    %1590 = vmatpush1.xpose.msra.mxu0 0.0
    %1591 = vmatprep.subr.mxu0 0.0
    %1592 = vmatpush1.xpose.msra.mxu0 0.0
    %1593 = vmatprep.subr.mxu0 0.0
    %1594 = vmatpush1.xpose.msra.mxu0 0.0
    %1595 = vmatprep.subr.mxu0 0.0
    %1596 = vmatpush1.xpose.msra.mxu0 0.0
    %1597 = vmatprep.subr.mxu0 0.0
    %1598 = vmatpush1.xpose.msra.mxu0 0.0
    %1599 = vmatprep.subr.mxu0 0.0
    %1600 = vmatpush1.xpose.msra.mxu0 0.0
    %1601 = vmatprep.subr.mxu0 0.0
    %1602 = vmatpush1.xpose.msra.mxu0 0.0
    %1603 = vmatprep.subr.mxu0 0.0
    %1604 = vmatpush1.xpose.msra.mxu0 0.0
    %1605 = vmatprep.subr.mxu0 0.0
    %1606 = vmatpush1.xpose.msra.mxu0 0.0
    %1607 = vmatprep.subr.mxu0 0.0
    %1608 = vmatpush1.xpose.msra.mxu0 0.0
    %1609 = vmatprep.subr.mxu0 0.0
    %1610 = vmatpush1.xpose.msra.mxu0 0.0
    %1611 = vmatprep.subr.mxu0 0.0
    %1612 = vmatpush1.xpose.msra.mxu0 0.0
    %1613 = vmatprep.subr.mxu0 0.0
    %1614 = vmatpush1.xpose.msra.mxu0 0.0
    %1615 = vmatprep.subr.mxu0 0.0
    %1616 = vmatpush1.xpose.msra.mxu0 0.0
    %1617 = vmatprep.subr.mxu0 0.0
    %1618 = vmatpush1.xpose.msra.mxu0 0.0
    %1619 = vmatprep.subr.mxu0 0.0
    %1620 = vmatpush1.xpose.msra.mxu0 0.0
    %1621 = vmatprep.subr.mxu0 0.0
    %1622 = vmatpush1.xpose.msra.mxu0 0.0
    %1623 = vmatprep.subr.mxu0 0.0
    %1624 = vmatpush1.xpose.msra.mxu0 0.0
    %1625 = vmatprep.subr.mxu0 0.0
    %1626 = vmatpush1.xpose.msra.mxu0 0.0
    %1627 = vmatprep.subr.mxu0 0.0
    %1628 = vmatpush1.xpose.msra.mxu0 0.0
    %1629 = vmatprep.subr.mxu0 0.0
    %1630 = vmatpush1.xpose.msra.mxu0 0.0
    %1631 = vmatprep.subr.mxu0 0.0
    %1632 = vmatpush1.xpose.msra.mxu0 0.0
    %1633 = vmatprep.subr.mxu0 0.0
    %1634 = vmatpush1.xpose.msra.mxu0 0.0
    %1635 = vmatprep.mubr.f32.mxu0 0.0
    %1636 = vmatmul.mubr.f32.gmra.mrb[0].mxu0 %v1555
    %v1637 = vpop.f32.mrb[0].mxu0
    %v1638 = vadd.f32 0.0, %v1637
    %v1639 = vpop.f32.mrb[0].mxu0
    %1640 = vmatprep.mubr.f32.mxu0 0.0
    %1641 = vmatmul.mubr.f32.gmra.mrb[0].mxu0 %v1557
    %v1642 = vpop.f32.mrb[0].mxu0
    %v1643 = vadd.f32 0.0, %v1642
    %v1644 = vpop.f32.mrb[0].mxu0
    %1645 = vmatprep.mubr.f32.mxu0 0.0
    %1646 = vmatmul.mubr.f32.gmra.mrb[0].mxu0 %v1559
    %v1647 = vpop.f32.mrb[0].mxu0
    %v1648 = vadd.f32 0.0, %v1647
    %v1649 = vpop.f32.mrb[0].mxu0
    %1650 = vmatprep.mubr.f32.mxu0 0.0
    %1651 = vmatmul.mubr.f32.gmra.mrb[0].mxu0 %v1561
    %v1652 = vpop.f32.mrb[0].mxu0
    %v1653 = vadd.f32 0.0, %v1652
    %v1654 = vpop.f32.mrb[0].mxu0
    %1655 = vdwg.mxu0
    %v1656 = vsel %vm417, %v1638, -1e+30
    %v1657 = vsel %vm418, %v1643, -1e+30
    %v1658 = vsel %vm419, %v1648, -1e+30
    %v1659 = vsel %vm420, %v1653, -1e+30
    %v1660 = vsel %vm437, %v1656, -inf
    %1661 = vmax.xlane.f32.xlu0 %v1660
    %v1662 = vpop.xlane.xlu0 %1661
    %v1663 = vsel %vm437, %v1657, -inf
    %1664 = vmax.xlane.f32.xlu0 %v1663
    %v1665 = vpop.xlane.xlu0 %1664
    %v1666 = vsel %vm437, %v1658, -inf
    %1667 = vmax.xlane.f32.xlu0 %v1666
    %v1668 = vpop.xlane.xlu0 %1667
    %v1669 = vsel %vm437, %v1659, -inf
    %1670 = vmax.xlane.f32.xlu0 %v1669
    %v1671 = vpop.xlane.xlu0 %1670
    %v1672 = vsub.f32 %v1656, %v1662
    %v1673 = vsub.f32 %v1657, %v1665
    %v1674 = vsub.f32 %v1658, %v1668
    %v1675 = vsub.f32 %v1659, %v1671
    %v1676 = vmul.f32 %v1672, 1.442695
    %v1677 = vpow.pop %v1676
    %v1678 = vmul.f32 %v1673, 1.442695
    %v1679 = vpow.pop %v1678
    %v1680 = vmul.f32 %v1674, 1.442695
    %v1681 = vpow.pop %v1680
    %v1682 = vmul.f32 %v1675, 1.442695
    %v1683 = vpow.pop %v1682
    %v1684 = vsel %vm437, %v1677, 0.0
    %1685 = vadd.xlane.f32.xlu0 %v1684
    %v1686 = vpop.xlane.xlu0 %1685
    %v1687 = vsel %vm437, %v1679, 0.0
    %1688 = vadd.xlane.f32.xlu0 %v1687
    %v1689 = vpop.xlane.xlu0 %1688
    %v1690 = vsel %vm437, %v1681, 0.0
    %1691 = vadd.xlane.f32.xlu0 %v1690
    %v1692 = vpop.xlane.xlu0 %1691
    %v1693 = vsel %vm437, %v1683, 0.0
    %1694 = vadd.xlane.f32.xlu0 %v1693
    %v1695 = vpop.xlane.xlu0 %1694
    %v1696 = vrcp.pop %v1686
    %v1697 = vrcp.pop %v1689
    %v1698 = vrcp.pop %v1692
    %v1699 = vrcp.pop %v1695
    %v1700 = vmul.f32 %v1677, %v1696
    %v1701 = vmul.f32 %v1679, %v1697
    %v1702 = vmul.f32 %v1681, %v1698
    %v1703 = vmul.f32 %v1683, %v1699
    %1704 = vrot.lane.b32.xlu0 %v332, 32
    %v1705 = vpop.permute.xlu0 %1704
    %1706 = vrot.lane.b32.xlu0 %v337, 32
    %v1707 = vpop.permute.xlu0 %1706
    %1708 = vrot.lane.b32.xlu0 %v342, 32
    %v1709 = vpop.permute.xlu0 %1708
    %1710 = vrot.lane.b32.xlu0 %v347, 32
    %v1711 = vpop.permute.xlu0 %1710
    %v1717 = vsel %vm437, %v1700, 0
    %v1720 = vsel %vm437, %v1701, 0
    %v1723 = vsel %vm437, %v1702, 0
    %v1726 = vsel %vm437, %v1703, 0
    %1728 = vmatprep.subr.mxu0 0.0
    %1729 = vmatpush1.msra.mxu0 %v1705
    %1730 = vmatprep.subr.mxu0 0.0
    %1731 = vmatpush1.msra.mxu0 %v1707
    %1732 = vmatprep.subr.mxu0 0.0
    %1733 = vmatpush1.msra.mxu0 %v1709
    %1734 = vmatprep.subr.mxu0 0.0
    %1735 = vmatpush1.msra.mxu0 %v1711
    %1736 = vmatprep.subr.mxu0 0.0
    %1737 = vmatpush1.msra.mxu0 0.0
    %1738 = vmatprep.subr.mxu0 0.0
    %1739 = vmatpush1.msra.mxu0 0.0
    %1740 = vmatprep.subr.mxu0 0.0
    %1741 = vmatpush1.msra.mxu0 0.0
    %1742 = vmatprep.subr.mxu0 0.0
    %1743 = vmatpush1.msra.mxu0 0.0
    %1744 = vmatprep.subr.mxu0 0.0
    %1745 = vmatpush1.msra.mxu0 0.0
    %1746 = vmatprep.subr.mxu0 0.0
    %1747 = vmatpush1.msra.mxu0 0.0
    %1748 = vmatprep.subr.mxu0 0.0
    %1749 = vmatpush1.msra.mxu0 0.0
    %1750 = vmatprep.subr.mxu0 0.0
    %1751 = vmatpush1.msra.mxu0 0.0
    %1752 = vmatprep.subr.mxu0 0.0
    %1753 = vmatpush1.msra.mxu0 0.0
    %1754 = vmatprep.subr.mxu0 0.0
    %1755 = vmatpush1.msra.mxu0 0.0
    %1756 = vmatprep.subr.mxu0 0.0
    %1757 = vmatpush1.msra.mxu0 0.0
    %1758 = vmatprep.subr.mxu0 0.0
    %1759 = vmatpush1.msra.mxu0 0.0
    %1760 = vmatprep.subr.mxu0 0.0
    %1761 = vmatpush1.msra.mxu0 0.0
    %1762 = vmatprep.subr.mxu0 0.0
    %1763 = vmatpush1.msra.mxu0 0.0
    %1764 = vmatprep.subr.mxu0 0.0
    %1765 = vmatpush1.msra.mxu0 0.0
    %1766 = vmatprep.subr.mxu0 0.0
    %1767 = vmatpush1.msra.mxu0 0.0
    %1768 = vmatprep.subr.mxu0 0.0
    %1769 = vmatpush1.msra.mxu0 0.0
    %1770 = vmatprep.subr.mxu0 0.0
    %1771 = vmatpush1.msra.mxu0 0.0
    %1772 = vmatprep.subr.mxu0 0.0
    %1773 = vmatpush1.msra.mxu0 0.0
    %1774 = vmatprep.subr.mxu0 0.0
    %1775 = vmatpush1.msra.mxu0 0.0
    %1776 = vmatprep.subr.mxu0 0.0
    %1777 = vmatpush1.msra.mxu0 0.0
    %1778 = vmatprep.subr.mxu0 0.0
    %1779 = vmatpush1.msra.mxu0 0.0
    %1780 = vmatprep.subr.mxu0 0.0
    %1781 = vmatpush1.msra.mxu0 0.0
    %1782 = vmatprep.subr.mxu0 0.0
    %1783 = vmatpush1.msra.mxu0 0.0
    %1784 = vmatprep.subr.mxu0 0.0
    %1785 = vmatpush1.msra.mxu0 0.0
    %1786 = vmatprep.subr.mxu0 0.0
    %1787 = vmatpush1.msra.mxu0 0.0
    %1788 = vmatprep.subr.mxu0 0.0
    %1789 = vmatpush1.msra.mxu0 0.0
    %1790 = vmatprep.subr.mxu0 0.0
    %1791 = vmatpush1.msra.mxu0 0.0
    %1792 = vmatprep.mubr.f32.mxu0 0.0
    %1793 = vmatmul.mubr.f32.gmra.mrb[0].mxu0 %v1717
    %v1794 = vpop.f32.mrb[0].mxu0
    %v1795 = vadd.f32 0.0, %v1794
    %v1796 = vpop.f32.mrb[0].mxu0
    %1797 = vmatprep.mubr.f32.mxu0 0.0
    %1798 = vmatmul.mubr.f32.gmra.mrb[0].mxu0 %v1720
    %v1799 = vpop.f32.mrb[0].mxu0
    %v1800 = vadd.f32 0.0, %v1799
    %v1801 = vpop.f32.mrb[0].mxu0
    %1802 = vmatprep.mubr.f32.mxu0 0.0
    %1803 = vmatmul.mubr.f32.gmra.mrb[0].mxu0 %v1723
    %v1804 = vpop.f32.mrb[0].mxu0
    %v1805 = vadd.f32 0.0, %v1804
    %v1806 = vpop.f32.mrb[0].mxu0
    %1807 = vmatprep.mubr.f32.mxu0 0.0
    %1808 = vmatmul.mubr.f32.gmra.mrb[0].mxu0 %v1726
    %v1809 = vpop.f32.mrb[0].mxu0
    %v1810 = vadd.f32 0.0, %v1809
    %v1811 = vpop.f32.mrb[0].mxu0
    %1812 = vdwg.mxu0
    %v1814 = vsel %vm437, %v1795, 0
    %v1817 = vsel %vm437, %v1800, 0
    %v1820 = vsel %vm437, %v1805, 0
    %v1823 = vsel %vm437, %v1810, 0
    %1825 = vmatprep.subr.mxu0 0.0
    %1826 = vmatpush1.msra.mxu0 %v433
    %1827 = vmatprep.subr.mxu0 0.0
    %1828 = vmatpush1.msra.mxu0 %v434
    %1829 = vmatprep.subr.mxu0 0.0
    %1830 = vmatpush1.msra.mxu0 %v435
    %1831 = vmatprep.subr.mxu0 0.0
    %1832 = vmatpush1.msra.mxu0 %v436
    %1833 = vmatprep.subr.mxu0 0.0
    %1834 = vmatpush1.msra.mxu0 0.0
    %1835 = vmatprep.subr.mxu0 0.0
    %1836 = vmatpush1.msra.mxu0 0.0
    %1837 = vmatprep.subr.mxu0 0.0
    %1838 = vmatpush1.msra.mxu0 0.0
    %1839 = vmatprep.subr.mxu0 0.0
    %1840 = vmatpush1.msra.mxu0 0.0
    %1841 = vmatprep.subr.mxu0 0.0
    %1842 = vmatpush1.msra.mxu0 0.0
    %1843 = vmatprep.subr.mxu0 0.0
    %1844 = vmatpush1.msra.mxu0 0.0
    %1845 = vmatprep.subr.mxu0 0.0
    %1846 = vmatpush1.msra.mxu0 0.0
    %1847 = vmatprep.subr.mxu0 0.0
    %1848 = vmatpush1.msra.mxu0 0.0
    %1849 = vmatprep.subr.mxu0 0.0
    %1850 = vmatpush1.msra.mxu0 0.0
    %1851 = vmatprep.subr.mxu0 0.0
    %1852 = vmatpush1.msra.mxu0 0.0
    %1853 = vmatprep.subr.mxu0 0.0
    %1854 = vmatpush1.msra.mxu0 0.0
    %1855 = vmatprep.subr.mxu0 0.0
    %1856 = vmatpush1.msra.mxu0 0.0
    %1857 = vmatprep.subr.mxu0 0.0
    %1858 = vmatpush1.msra.mxu0 0.0
    %1859 = vmatprep.subr.mxu0 0.0
    %1860 = vmatpush1.msra.mxu0 0.0
    %1861 = vmatprep.subr.mxu0 0.0
    %1862 = vmatpush1.msra.mxu0 0.0
    %1863 = vmatprep.subr.mxu0 0.0
    %1864 = vmatpush1.msra.mxu0 0.0
    %1865 = vmatprep.subr.mxu0 0.0
    %1866 = vmatpush1.msra.mxu0 0.0
    %1867 = vmatprep.subr.mxu0 0.0
    %1868 = vmatpush1.msra.mxu0 0.0
    %1869 = vmatprep.subr.mxu0 0.0
    %1870 = vmatpush1.msra.mxu0 0.0
    %1871 = vmatprep.subr.mxu0 0.0
    %1872 = vmatpush1.msra.mxu0 0.0
    %1873 = vmatprep.subr.mxu0 0.0
    %1874 = vmatpush1.msra.mxu0 0.0
    %1875 = vmatprep.subr.mxu0 0.0
    %1876 = vmatpush1.msra.mxu0 0.0
    %1877 = vmatprep.subr.mxu0 0.0
    %1878 = vmatpush1.msra.mxu0 0.0
    %1879 = vmatprep.subr.mxu0 0.0
    %1880 = vmatpush1.msra.mxu0 0.0
    %1881 = vmatprep.subr.mxu0 0.0
    %1882 = vmatpush1.msra.mxu0 0.0
    %1883 = vmatprep.subr.mxu0 0.0
    %1884 = vmatpush1.msra.mxu0 0.0
    %1885 = vmatprep.subr.mxu0 0.0
    %1886 = vmatpush1.msra.mxu0 0.0
    %1887 = vmatprep.subr.mxu0 0.0
    %1888 = vmatpush1.msra.mxu0 0.0
    %1889 = vmatprep.mubr.f32.mxu0 0.0
    %1890 = vmatmul.mubr.f32.gmra.mrb[0].mxu0 %v1814
    %v1891 = vpop.f32.mrb[0].mxu0
    %v1892 = vadd.f32 0.0, %v1891
    %v1893 = vpop.f32.mrb[0].mxu0
    %1894 = vmatprep.mubr.f32.mxu0 0.0
    %1895 = vmatmul.mubr.f32.gmra.mrb[0].mxu0 %v1817
    %v1896 = vpop.f32.mrb[0].mxu0
    %v1897 = vadd.f32 0.0, %v1896
    %v1898 = vpop.f32.mrb[0].mxu0
    %1899 = vmatprep.mubr.f32.mxu0 0.0
    %1900 = vmatmul.mubr.f32.gmra.mrb[0].mxu0 %v1820
    %v1901 = vpop.f32.mrb[0].mxu0
    %v1902 = vadd.f32 0.0, %v1901
    %v1903 = vpop.f32.mrb[0].mxu0
    %1904 = vmatprep.mubr.f32.mxu0 0.0
    %1905 = vmatmul.mubr.f32.gmra.mrb[0].mxu0 %v1823
    %v1906 = vpop.f32.mrb[0].mxu0
    %v1907 = vadd.f32 0.0, %v1906
    %v1908 = vpop.f32.mrb[0].mxu0
    %1909 = vdwg.mxu0
    %v1910 = vadd.f32 %v1535, %v1892
    %v1911 = vadd.f32 %v1536, %v1897
    %v1912 = vadd.f32 %v1537, %v1902
    %v1913 = vadd.f32 %v1538, %v1907
    %v1914 = vld [vmem:[%s4] sm:$0x1]
    %v1916 = vlaneseq
    %v1917 = vshrl.u32 %v1916, 7
    %v1918 = vsub.s32 0, %v1917
    %v1919 = vrot.slane %v1914, %v1918
    %v1921 = vadd.f32 %v1910, %v1919
    %v1922 = vadd.f32 %v1911, %v1919
    %v1923 = vadd.f32 %v1912, %v1919
    %v1924 = vadd.f32 %v1913, %v1919
    %v1925 = vadd.f32 %v107, %v1921
    %v1926 = vadd.f32 %v108, %v1922
    %v1927 = vadd.f32 %v109, %v1923
    %v1928 = vadd.f32 %v110, %v1924
    %1929 = vadd.xlane.f32.xlu0 %v1925
    %v1930 = vpop.xlane.xlu0 %1929
    %1931 = vadd.xlane.f32.xlu0 %v1926
    %v1932 = vpop.xlane.xlu0 %1931
    %1933 = vadd.xlane.f32.xlu0 %v1927
    %v1934 = vpop.xlane.xlu0 %1933
    %1935 = vadd.xlane.f32.xlu0 %v1928
    %v1936 = vpop.xlane.xlu0 %1935
    %v1937 = vrcp.pop 128.0
    %v1938 = vmul.f32 %v1930, %v1937
    %v1939 = vmul.f32 %v1932, %v1937
    %v1940 = vmul.f32 %v1934, %v1937
    %v1941 = vmul.f32 %v1936, %v1937
    %v1942 = vsub.f32 %v1925, %v1938
    %v1943 = vsub.f32 %v1926, %v1939
    %v1944 = vsub.f32 %v1927, %v1940
    %v1945 = vsub.f32 %v1928, %v1941
    %v1946 = vmul.f32 %v1942, %v1942
    %v1947 = vmul.f32 %v1943, %v1943
    %v1948 = vmul.f32 %v1944, %v1944
    %v1949 = vmul.f32 %v1945, %v1945
    %1950 = vadd.xlane.f32.xlu0 %v1946
    %v1951 = vpop.xlane.xlu0 %1950
    %1952 = vadd.xlane.f32.xlu0 %v1947
    %v1953 = vpop.xlane.xlu0 %1952
    %1954 = vadd.xlane.f32.xlu0 %v1948
    %v1955 = vpop.xlane.xlu0 %1954
    %1956 = vadd.xlane.f32.xlu0 %v1949
    %v1957 = vpop.xlane.xlu0 %1956
    %v1958 = vmul.f32 %v1951, %v1937
    %v1959 = vmul.f32 %v1953, %v1937
    %v1960 = vmul.f32 %v1955, %v1937
    %v1961 = vmul.f32 %v1957, %v1937
    %v1962 = vadd.f32 %v1958, 1e-05
    %v1963 = vadd.f32 %v1959, 1e-05
    %v1964 = vadd.f32 %v1960, 1e-05
    %v1965 = vadd.f32 %v1961, 1e-05
    %v1966 = vrsqrt.pop %v1962
    %v1967 = vrsqrt.pop %v1963
    %v1968 = vrsqrt.pop %v1964
    %v1969 = vrsqrt.pop %v1965
    %v1970 = vmul.f32 %v1942, %v1966
    %v1971 = vmul.f32 %v1943, %v1967
    %v1972 = vmul.f32 %v1944, %v1968
    %v1973 = vmul.f32 %v1945, %v1969
    %v1974 = vld [vmem:[%s5] sm:$0x1]
    %v1976 = vlaneseq
    %v1977 = vshrl.u32 %v1976, 7
    %v1978 = vsub.s32 0, %v1977
    %v1979 = vrot.slane %v1974, %v1978
    %v1981 = vmul.f32 %v1970, %v1979
    %v1982 = vmul.f32 %v1971, %v1979
    %v1983 = vmul.f32 %v1972, %v1979
    %v1984 = vmul.f32 %v1973, %v1979
    %v1985 = vld [vmem:[%s6] sm:$0x1]
    %v1987 = vlaneseq
    %v1988 = vshrl.u32 %v1987, 7
    %v1989 = vsub.s32 0, %v1988
    %v1990 = vrot.slane %v1985, %v1989
    %v1992 = vadd.f32 %v1981, %v1990
    %v1993 = vadd.f32 %v1982, %v1990
    %v1994 = vadd.f32 %v1983, %v1990
    %v1995 = vadd.f32 %v1984, %v1990
    %v1996 = vld [vmem:[#allocation8] sm:$0xff]
    %v1997 = vld [vmem:[#allocation8 + $0x8] sm:$0xff]
    %v1998 = vld [vmem:[#allocation8 + $0x10] sm:$0xff]
    %v1999 = vld [vmem:[#allocation8 + $0x18] sm:$0xff]
    %v2000 = vld [vmem:[#allocation8 + $0x20] sm:$0xff]
    %v2001 = vld [vmem:[#allocation8 + $0x28] sm:$0xff]
    %v2002 = vld [vmem:[#allocation8 + $0x30] sm:$0xff]
    %v2003 = vld [vmem:[#allocation8 + $0x38] sm:$0xff]
    %v2004 = vld [vmem:[#allocation8 + $0x40] sm:$0xff]
    %v2005 = vld [vmem:[#allocation8 + $0x48] sm:$0xff]
    %v2006 = vld [vmem:[#allocation8 + $0x50] sm:$0xff]
    %v2007 = vld [vmem:[#allocation8 + $0x58] sm:$0xff]
    %v2008 = vld [vmem:[#allocation8 + $0x60] sm:$0xff]
    %v2009 = vld [vmem:[#allocation8 + $0x68] sm:$0xff]
    %v2010 = vld [vmem:[#allocation8 + $0x70] sm:$0xff]
    %v2011 = vld [vmem:[#allocation8 + $0x78] sm:$0xff]
    %v2012 = vld [vmem:[#allocation8 + $0x80] sm:$0xff]
    %v2013 = vld [vmem:[#allocation8 + $0x88] sm:$0xff]
    %v2014 = vld [vmem:[#allocation8 + $0x90] sm:$0xff]
    %v2015 = vld [vmem:[#allocation8 + $0x98] sm:$0xff]
    %v2016 = vld [vmem:[#allocation8 + $0xa0] sm:$0xff]
    %v2017 = vld [vmem:[#allocation8 + $0xa8] sm:$0xff]
    %v2018 = vld [vmem:[#allocation8 + $0xb0] sm:$0xff]
    %v2019 = vld [vmem:[#allocation8 + $0xb8] sm:$0xff]
    %v2020 = vld [vmem:[#allocation8 + $0xc0] sm:$0xff]
    %v2021 = vld [vmem:[#allocation8 + $0xc8] sm:$0xff]
    %v2022 = vld [vmem:[#allocation8 + $0xd0] sm:$0xff]
    %v2023 = vld [vmem:[#allocation8 + $0xd8] sm:$0xff]
    %v2024 = vld [vmem:[#allocation8 + $0xe0] sm:$0xff]
    %v2025 = vld [vmem:[#allocation8 + $0xe8] sm:$0xff]
    %v2026 = vld [vmem:[#allocation8 + $0xf0] sm:$0xff]
    %v2027 = vld [vmem:[#allocation8 + $0xf8] sm:$0xff]
    %2028 = vmatprep.subr.mxu0 %v1997
    %2029 = vmatpush1.msra.mxu0 %v1996
    %2030 = vmatprep.subr.mxu0 %v1999
    %2031 = vmatpush1.msra.mxu0 %v1998
    %2032 = vmatprep.subr.mxu0 %v2001
    %2033 = vmatpush1.msra.mxu0 %v2000
    %2034 = vmatprep.subr.mxu0 %v2003
    %2035 = vmatpush1.msra.mxu0 %v2002
    %2036 = vmatprep.subr.mxu0 %v2005
    %2037 = vmatpush1.msra.mxu0 %v2004
    %2038 = vmatprep.subr.mxu0 %v2007
    %2039 = vmatpush1.msra.mxu0 %v2006
    %2040 = vmatprep.subr.mxu0 %v2009
    %2041 = vmatpush1.msra.mxu0 %v2008
    %2042 = vmatprep.subr.mxu0 %v2011
    %2043 = vmatpush1.msra.mxu0 %v2010
    %2044 = vmatprep.subr.mxu0 %v2013
    %2045 = vmatpush1.msra.mxu0 %v2012
    %2046 = vmatprep.subr.mxu0 %v2015
    %2047 = vmatpush1.msra.mxu0 %v2014
    %2048 = vmatprep.subr.mxu0 %v2017
    %2049 = vmatpush1.msra.mxu0 %v2016
    %2050 = vmatprep.subr.mxu0 %v2019
    %2051 = vmatpush1.msra.mxu0 %v2018
    %2052 = vmatprep.subr.mxu0 %v2021
    %2053 = vmatpush1.msra.mxu0 %v2020
    %2054 = vmatprep.subr.mxu0 %v2023
    %2055 = vmatpush1.msra.mxu0 %v2022
    %2056 = vmatprep.subr.mxu0 %v2025
    %2057 = vmatpush1.msra.mxu0 %v2024
    %2058 = vmatprep.subr.mxu0 %v2027
    %2059 = vmatpush1.msra.mxu0 %v2026
    %2060 = vmatprep.subr.mxu0 0.0
    %2061 = vmatpush1.msra.mxu0 0.0
    %2062 = vmatprep.subr.mxu0 0.0
    %2063 = vmatpush1.msra.mxu0 0.0
    %2064 = vmatprep.subr.mxu0 0.0
    %2065 = vmatpush1.msra.mxu0 0.0
    %2066 = vmatprep.subr.mxu0 0.0
    %2067 = vmatpush1.msra.mxu0 0.0
    %2068 = vmatprep.subr.mxu0 0.0
    %2069 = vmatpush1.msra.mxu0 0.0
    %2070 = vmatprep.subr.mxu0 0.0
    %2071 = vmatpush1.msra.mxu0 0.0
    %2072 = vmatprep.subr.mxu0 0.0
    %2073 = vmatpush1.msra.mxu0 0.0
    %2074 = vmatprep.subr.mxu0 0.0
    %2075 = vmatpush1.msra.mxu0 0.0
    %2076 = vmatprep.subr.mxu0 0.0
    %2077 = vmatpush1.msra.mxu0 0.0
    %2078 = vmatprep.subr.mxu0 0.0
    %2079 = vmatpush1.msra.mxu0 0.0
    %2080 = vmatprep.subr.mxu0 0.0
    %2081 = vmatpush1.msra.mxu0 0.0
    %2082 = vmatprep.subr.mxu0 0.0
    %2083 = vmatpush1.msra.mxu0 0.0
    %2084 = vmatprep.subr.mxu0 0.0
    %2085 = vmatpush1.msra.mxu0 0.0
    %2086 = vmatprep.subr.mxu0 0.0
    %2087 = vmatpush1.msra.mxu0 0.0
    %2088 = vmatprep.subr.mxu0 0.0
    %2089 = vmatpush1.msra.mxu0 0.0
    %2090 = vmatprep.subr.mxu0 0.0
    %2091 = vmatpush1.msra.mxu0 0.0
    %2092 = vmatprep.mubr.f32.mxu0 0.0
    %2093 = vmatmul.mubr.f32.gmra.mrb[0].mxu0 %v1992
    %v2094 = vpop.f32.mrb[0].mxu0
    %v2095 = vadd.f32 0.0, %v2094
    %v2096 = vpop.f32.mrb[0].mxu0
    %v2097 = vadd.f32 0.0, %v2096
    %2098 = vmatprep.mubr.f32.mxu0 0.0
    %2099 = vmatmul.mubr.f32.gmra.mrb[0].mxu0 %v1993
    %v2100 = vpop.f32.mrb[0].mxu0
    %v2101 = vadd.f32 0.0, %v2100
    %v2102 = vpop.f32.mrb[0].mxu0
    %v2103 = vadd.f32 0.0, %v2102
    %2104 = vmatprep.mubr.f32.mxu0 0.0
    %2105 = vmatmul.mubr.f32.gmra.mrb[0].mxu0 %v1994
    %v2106 = vpop.f32.mrb[0].mxu0
    %v2107 = vadd.f32 0.0, %v2106
    %v2108 = vpop.f32.mrb[0].mxu0
    %v2109 = vadd.f32 0.0, %v2108
    %2110 = vmatprep.mubr.f32.mxu0 0.0
    %2111 = vmatmul.mubr.f32.gmra.mrb[0].mxu0 %v1995
    %v2112 = vpop.f32.mrb[0].mxu0
    %v2113 = vadd.f32 0.0, %v2112
    %v2114 = vpop.f32.mrb[0].mxu0
    %v2115 = vadd.f32 0.0, %v2114
    %2116 = vdwg.mxu0
    %v2117 = vmul.f32 %v2095, 0.5
    %v2118 = vmul.f32 %v2097, 0.5
    %v2119 = vmul.f32 %v2101, 0.5
    %v2120 = vmul.f32 %v2103, 0.5
    %v2121 = vmul.f32 %v2107, 0.5
    %v2122 = vmul.f32 %v2109, 0.5
    %v2123 = vmul.f32 %v2113, 0.5
    %v2124 = vmul.f32 %v2115, 0.5
    %v2125 = vmul.f32 %v2095, %v2095
    %v2126 = vmul.f32 %v2097, %v2097
    %v2127 = vmul.f32 %v2101, %v2101
    %v2128 = vmul.f32 %v2103, %v2103
    %v2129 = vmul.f32 %v2107, %v2107
    %v2130 = vmul.f32 %v2109, %v2109
    %v2131 = vmul.f32 %v2113, %v2113
    %v2132 = vmul.f32 %v2115, %v2115
    %v2133 = vmul.f32 %v2125, %v2095
    %v2134 = vmul.f32 %v2126, %v2097
    %v2135 = vmul.f32 %v2127, %v2101
    %v2136 = vmul.f32 %v2128, %v2103
    %v2137 = vmul.f32 %v2129, %v2107
    %v2138 = vmul.f32 %v2130, %v2109
    %v2139 = vmul.f32 %v2131, %v2113
    %v2140 = vmul.f32 %v2132, %v2115
    %v2141 = vmul.f32 %v2133, 0.044715
    %v2142 = vmul.f32 %v2134, 0.044715
    %v2143 = vmul.f32 %v2135, 0.044715
    %v2144 = vmul.f32 %v2136, 0.044715
    %v2145 = vmul.f32 %v2137, 0.044715
    %v2146 = vmul.f32 %v2138, 0.044715
    %v2147 = vmul.f32 %v2139, 0.044715
    %v2148 = vmul.f32 %v2140, 0.044715
    %v2149 = vadd.f32 %v2095, %v2141
    %v2150 = vadd.f32 %v2097, %v2142
    %v2151 = vadd.f32 %v2101, %v2143
    %v2152 = vadd.f32 %v2103, %v2144
    %v2153 = vadd.f32 %v2107, %v2145
    %v2154 = vadd.f32 %v2109, %v2146
    %v2155 = vadd.f32 %v2113, %v2147
    %v2156 = vadd.f32 %v2115, %v2148
    %v2157 = vmul.f32 %v2149, 0.7978846
    %v2158 = vmul.f32 %v2150, 0.7978846
    %v2159 = vmul.f32 %v2151, 0.7978846
    %v2160 = vmul.f32 %v2152, 0.7978846
    %v2161 = vmul.f32 %v2153, 0.7978846
    %v2162 = vmul.f32 %v2154, 0.7978846
    %v2163 = vmul.f32 %v2155, 0.7978846
    %v2164 = vmul.f32 %v2156, 0.7978846
    %v2165 = vtanh.pop %v2157
    %v2166 = vtanh.pop %v2158
    %v2167 = vtanh.pop %v2159
    %v2168 = vtanh.pop %v2160
    %v2169 = vtanh.pop %v2161
    %v2170 = vtanh.pop %v2162
    %v2171 = vtanh.pop %v2163
    %v2172 = vtanh.pop %v2164
    %v2173 = vadd.f32 %v2165, 1.0
    %v2174 = vadd.f32 %v2166, 1.0
    %v2175 = vadd.f32 %v2167, 1.0
    %v2176 = vadd.f32 %v2168, 1.0
    %v2177 = vadd.f32 %v2169, 1.0
    %v2178 = vadd.f32 %v2170, 1.0
    %v2179 = vadd.f32 %v2171, 1.0
    %v2180 = vadd.f32 %v2172, 1.0
    %v2181 = vmul.f32 %v2117, %v2173
    %v2182 = vmul.f32 %v2118, %v2174
    %v2183 = vmul.f32 %v2119, %v2175
    %v2184 = vmul.f32 %v2120, %v2176
    %v2185 = vmul.f32 %v2121, %v2177
    %v2186 = vmul.f32 %v2122, %v2178
    %v2187 = vmul.f32 %v2123, %v2179
    %v2188 = vmul.f32 %v2124, %v2180
    %v2189 = vld [vmem:[#allocation10] sm:$0xff]
    %v2190 = vld [vmem:[#allocation10 + $0x8] sm:$0xff]
    %v2191 = vld [vmem:[#allocation10 + $0x10] sm:$0xff]
    %v2192 = vld [vmem:[#allocation10 + $0x18] sm:$0xff]
    %v2193 = vld [vmem:[#allocation10 + $0x20] sm:$0xff]
    %v2194 = vld [vmem:[#allocation10 + $0x28] sm:$0xff]
    %v2195 = vld [vmem:[#allocation10 + $0x30] sm:$0xff]
    %v2196 = vld [vmem:[#allocation10 + $0x38] sm:$0xff]
    %v2197 = vld [vmem:[#allocation10 + $0x40] sm:$0xff]
    %v2198 = vld [vmem:[#allocation10 + $0x48] sm:$0xff]
    %v2199 = vld [vmem:[#allocation10 + $0x50] sm:$0xff]
    %v2200 = vld [vmem:[#allocation10 + $0x58] sm:$0xff]
    %v2201 = vld [vmem:[#allocation10 + $0x60] sm:$0xff]
    %v2202 = vld [vmem:[#allocation10 + $0x68] sm:$0xff]
    %v2203 = vld [vmem:[#allocation10 + $0x70] sm:$0xff]
    %v2204 = vld [vmem:[#allocation10 + $0x78] sm:$0xff]
    %v2205 = vld [vmem:[#allocation10 + $0x80] sm:$0xff]
    %v2206 = vld [vmem:[#allocation10 + $0x88] sm:$0xff]
    %v2207 = vld [vmem:[#allocation10 + $0x90] sm:$0xff]
    %v2208 = vld [vmem:[#allocation10 + $0x98] sm:$0xff]
    %v2209 = vld [vmem:[#allocation10 + $0xa0] sm:$0xff]
    %v2210 = vld [vmem:[#allocation10 + $0xa8] sm:$0xff]
    %v2211 = vld [vmem:[#allocation10 + $0xb0] sm:$0xff]
    %v2212 = vld [vmem:[#allocation10 + $0xb8] sm:$0xff]
    %v2213 = vld [vmem:[#allocation10 + $0xc0] sm:$0xff]
    %v2214 = vld [vmem:[#allocation10 + $0xc8] sm:$0xff]
    %v2215 = vld [vmem:[#allocation10 + $0xd0] sm:$0xff]
    %v2216 = vld [vmem:[#allocation10 + $0xd8] sm:$0xff]
    %v2217 = vld [vmem:[#allocation10 + $0xe0] sm:$0xff]
    %v2218 = vld [vmem:[#allocation10 + $0xe8] sm:$0xff]
    %v2219 = vld [vmem:[#allocation10 + $0xf0] sm:$0xff]
    %v2220 = vld [vmem:[#allocation10 + $0xf8] sm:$0xff]
    %2221 = vmatprep.subr.mxu0 0.0
    %2222 = vmatpush1.msra.mxu0 %v2189
    %2223 = vmatprep.subr.mxu0 0.0
    %2224 = vmatpush1.msra.mxu0 %v2190
    %2225 = vmatprep.subr.mxu0 0.0
    %2226 = vmatpush1.msra.mxu0 %v2191
    %2227 = vmatprep.subr.mxu0 0.0
    %2228 = vmatpush1.msra.mxu0 %v2192
    %2229 = vmatprep.subr.mxu0 0.0
    %2230 = vmatpush1.msra.mxu0 %v2193
    %2231 = vmatprep.subr.mxu0 0.0
    %2232 = vmatpush1.msra.mxu0 %v2194
    %2233 = vmatprep.subr.mxu0 0.0
    %2234 = vmatpush1.msra.mxu0 %v2195
    %2235 = vmatprep.subr.mxu0 0.0
    %2236 = vmatpush1.msra.mxu0 %v2196
    %2237 = vmatprep.subr.mxu0 0.0
    %2238 = vmatpush1.msra.mxu0 %v2197
    %2239 = vmatprep.subr.mxu0 0.0
    %2240 = vmatpush1.msra.mxu0 %v2198
    %2241 = vmatprep.subr.mxu0 0.0
    %2242 = vmatpush1.msra.mxu0 %v2199
    %2243 = vmatprep.subr.mxu0 0.0
    %2244 = vmatpush1.msra.mxu0 %v2200
    %2245 = vmatprep.subr.mxu0 0.0
    %2246 = vmatpush1.msra.mxu0 %v2201
    %2247 = vmatprep.subr.mxu0 0.0
    %2248 = vmatpush1.msra.mxu0 %v2202
    %2249 = vmatprep.subr.mxu0 0.0
    %2250 = vmatpush1.msra.mxu0 %v2203
    %2251 = vmatprep.subr.mxu0 0.0
    %2252 = vmatpush1.msra.mxu0 %v2204
    %2253 = vmatprep.subr.mxu0 0.0
    %2254 = vmatpush1.msra.mxu0 %v2205
    %2255 = vmatprep.subr.mxu0 0.0
    %2256 = vmatpush1.msra.mxu0 %v2206
    %2257 = vmatprep.subr.mxu0 0.0
    %2258 = vmatpush1.msra.mxu0 %v2207
    %2259 = vmatprep.subr.mxu0 0.0
    %2260 = vmatpush1.msra.mxu0 %v2208
    %2261 = vmatprep.subr.mxu0 0.0
    %2262 = vmatpush1.msra.mxu0 %v2209
    %2263 = vmatprep.subr.mxu0 0.0
    %2264 = vmatpush1.msra.mxu0 %v2210
    %2265 = vmatprep.subr.mxu0 0.0
    %2266 = vmatpush1.msra.mxu0 %v2211
    %2267 = vmatprep.subr.mxu0 0.0
    %2268 = vmatpush1.msra.mxu0 %v2212
    %2269 = vmatprep.subr.mxu0 0.0
    %2270 = vmatpush1.msra.mxu0 %v2213
    %2271 = vmatprep.subr.mxu0 0.0
    %2272 = vmatpush1.msra.mxu0 %v2214
    %2273 = vmatprep.subr.mxu0 0.0
    %2274 = vmatpush1.msra.mxu0 %v2215
    %2275 = vmatprep.subr.mxu0 0.0
    %2276 = vmatpush1.msra.mxu0 %v2216
    %2277 = vmatprep.subr.mxu0 0.0
    %2278 = vmatpush1.msra.mxu0 %v2217
    %2279 = vmatprep.subr.mxu0 0.0
    %2280 = vmatpush1.msra.mxu0 %v2218
    %2281 = vmatprep.subr.mxu0 0.0
    %2282 = vmatpush1.msra.mxu0 %v2219
    %2283 = vmatprep.subr.mxu0 0.0
    %2284 = vmatpush1.msra.mxu0 %v2220
    %2285 = vmatprep.mubr.f32.mxu0 %v2182
    %2286 = vmatmul.mubr.f32.gmra.mrb[0].mxu0 %v2181
    %v2287 = vpop.f32.mrb[0].mxu0
    %v2288 = vadd.f32 0.0, %v2287
    %v2289 = vpop.f32.mrb[0].mxu0
    %2290 = vmatprep.mubr.f32.mxu0 %v2184
    %2291 = vmatmul.mubr.f32.gmra.mrb[0].mxu0 %v2183
    %v2292 = vpop.f32.mrb[0].mxu0
    %v2293 = vadd.f32 0.0, %v2292
    %v2294 = vpop.f32.mrb[0].mxu0
    %2295 = vmatprep.mubr.f32.mxu0 %v2186
    %2296 = vmatmul.mubr.f32.gmra.mrb[0].mxu0 %v2185
    %v2297 = vpop.f32.mrb[0].mxu0
    %v2298 = vadd.f32 0.0, %v2297
    %v2299 = vpop.f32.mrb[0].mxu0
    %2300 = vmatprep.mubr.f32.mxu0 %v2188
    %2301 = vmatmul.mubr.f32.gmra.mrb[0].mxu0 %v2187
    %v2302 = vpop.f32.mrb[0].mxu0
    %v2303 = vadd.f32 0.0, %v2302
    %v2304 = vpop.f32.mrb[0].mxu0
    %2305 = vdwg.mxu0
    %v2306 = vadd.f32 %v1992, %v2288
    %v2307 = vadd.f32 %v1993, %v2293
    %v2308 = vadd.f32 %v1994, %v2298
    %v2309 = vadd.f32 %v1995, %v2303
    %2310 = vadd.xlane.f32.xlu0 %v2306
    %v2311 = vpop.xlane.xlu0 %2310
    %2312 = vadd.xlane.f32.xlu0 %v2307
    %v2313 = vpop.xlane.xlu0 %2312
    %2314 = vadd.xlane.f32.xlu0 %v2308
    %v2315 = vpop.xlane.xlu0 %2314
    %2316 = vadd.xlane.f32.xlu0 %v2309
    %v2317 = vpop.xlane.xlu0 %2316
    %v2318 = vmul.f32 %v2311, %v1937
    %v2319 = vmul.f32 %v2313, %v1937
    %v2320 = vmul.f32 %v2315, %v1937
    %v2321 = vmul.f32 %v2317, %v1937
    %v2322 = vsub.f32 %v2306, %v2318
    %v2323 = vsub.f32 %v2307, %v2319
    %v2324 = vsub.f32 %v2308, %v2320
    %v2325 = vsub.f32 %v2309, %v2321
    %v2326 = vmul.f32 %v2322, %v2322
    %v2327 = vmul.f32 %v2323, %v2323
    %v2328 = vmul.f32 %v2324, %v2324
    %v2329 = vmul.f32 %v2325, %v2325
    %2330 = vadd.xlane.f32.xlu0 %v2326
    %v2331 = vpop.xlane.xlu0 %2330
    %2332 = vadd.xlane.f32.xlu0 %v2327
    %v2333 = vpop.xlane.xlu0 %2332
    %2334 = vadd.xlane.f32.xlu0 %v2328
    %v2335 = vpop.xlane.xlu0 %2334
    %2336 = vadd.xlane.f32.xlu0 %v2329
    %v2337 = vpop.xlane.xlu0 %2336
    %v2338 = vmul.f32 %v2331, %v1937
    %v2339 = vmul.f32 %v2333, %v1937
    %v2340 = vmul.f32 %v2335, %v1937
    %v2341 = vmul.f32 %v2337, %v1937
    %v2342 = vadd.f32 %v2338, 1e-05
    %v2343 = vadd.f32 %v2339, 1e-05
    %v2344 = vadd.f32 %v2340, 1e-05
    %v2345 = vadd.f32 %v2341, 1e-05
    %v2346 = vrsqrt.pop %v2342
    %v2347 = vrsqrt.pop %v2343
    %v2348 = vrsqrt.pop %v2344
    %v2349 = vrsqrt.pop %v2345
    %v2350 = vmul.f32 %v2322, %v2346
    %v2351 = vmul.f32 %v2323, %v2347
    %v2352 = vmul.f32 %v2324, %v2348
    %v2353 = vmul.f32 %v2325, %v2349
    %v2354 = vld [vmem:[%s9] sm:$0x1]
    %v2356 = vlaneseq
    %v2357 = vshrl.u32 %v2356, 7
    %v2358 = vsub.s32 0, %v2357
    %v2359 = vrot.slane %v2354, %v2358
    %v2361 = vmul.f32 %v2350, %v2359
    %v2362 = vmul.f32 %v2351, %v2359
    %v2363 = vmul.f32 %v2352, %v2359
    %v2364 = vmul.f32 %v2353, %v2359
    %v2365 = vld [vmem:[%s10] sm:$0x1]
    %v2367 = vlaneseq
    %v2368 = vshrl.u32 %v2367, 7
    %v2369 = vsub.s32 0, %v2368
    %v2370 = vrot.slane %v2365, %v2369
    %v2372 = vadd.f32 %v2361, %v2370
    %v2373 = vadd.f32 %v2362, %v2370
    %v2374 = vadd.f32 %v2363, %v2370
    %v2375 = vadd.f32 %v2364, %v2370
    %2376 = vst [vmem:[#allocation11] sm:$0xff] %v2372
    %2377 = vst [vmem:[#allocation11 + $0x8] sm:$0xff] %v2373
    %2378 = vst [vmem:[#allocation11 + $0x10] sm:$0xff] %v2374
    %2379 = vst [vmem:[#allocation11 + $0x18] sm:$0xff] %v2375
    // Predicated region
    $region66: #{tpu_custom_call.1} parent=1 // pred_check
      _
    $region67: #{tpu_custom_call.1} parent=1 // pred_check_branch
      %2381 = sbr.rel (0) target = $region69
    $region68: #{tpu_custom_call.1} parent=1 // pred_region
      %s2383 = ssub.s32 512, 512
      %2384 = vsyncadd [#allocation4], %s2383
      %s2385 = sshll.u32 [#allocation11], 4
      %s2386 = int_to_ptr.vmem [resolvable:$true] %s2385
      %2391 = dma.vmem_to_hbm [thread:$0]  %s2386, 512, %s11, [#allocation4], 128, 128, 8
    $region69: #{tpu_custom_call.1} parent=1 // pred_fallthru
      _
    // Predicated region
    $region70: #{tpu_custom_call.1} parent=1 // pred_check
      _
    $region71: #{tpu_custom_call.1} parent=1 // pred_check_branch
      %2393 = sbr.rel (0) target = $region73
    $region72: #{tpu_custom_call.1} parent=1 // pred_region
      %2394 = dma.done [#allocation4], 512
    $region73: #{tpu_custom_call.1} parent=1 // pred_fallthru
      _
    %2395 = vsyncpa [#allocation3], 1
    %2396 = vsyncpa [#allocation6], 1
    %2397 = vsyncpa [#allocation9], 1
    %2398 = vsyncpa [#allocation4], 1

</llo_original>
